<compile_context>
chip_gen: v5e
topology: v5e:2x2
jax: 0.10.0
libtpu: 0.0.40
codegen_flags: <defaults>
</compile_context>

<pallas_src>
import jax
import jax.numpy as jnp
from jax import lax
from jax.experimental import pallas as pl
from jax.experimental.pallas import tpu as pltpu

F_BACKBONE = 128    # synthetic backbone num_features (real EfficientNet-B4: 1792)
LSTM_HIDDEN = 256   # matches module default
CLS_HIDDEN = 256    # matches classifier hidden size


def _pick_hw_tile(hw, cap=8192):
    """Largest multiple of 128 that divides HW (<= cap); fall back to full HW."""
    if hw % 128 != 0:
        return hw
    best, m = 128, 128
    while m <= min(hw, cap):
        if hw % m == 0:
            best = m
        m += 128
    return best


def _pick_frb(bt):
    # FRB is a multiple of 8 so FRB*C (C=3) is sublane-aligned; prefer 16
    # (FRB*C=48 = bf16 16-sublane tile) once there is enough work per group.
    return 16 if bt >= 32 else 8


# ----------------------------------------------------------------------------
# Kernel 1: synthetic backbone
#   per-pixel 1x1 conv (C -> F) as W(F,C) @ x(C,hw_tile) + ReLU on the MXU;
#   global average pool as a VPU/XLU lane reduction accumulated into an
#   (F, FRB) scratch, transposed + scaled once in the finalize.
# ----------------------------------------------------------------------------
def backbone_forward(x_2d, wc, bc, *, frb, hw_tile=None):
    """x_2d: (BTp*C, HW) bf16; wc: (F, C) bf16; bc: (F, 1) f32 -> (BTp, F) f32."""
    F, C = wc.shape
    BTpC, HW = x_2d.shape
    BTp = BTpC // C
    assert BTp * C == BTpC and BTp % frb == 0, "caller pads B*T to a multiple of frb"
    if hw_tile is None:
        hw_tile = _pick_hw_tile(HW)
    assert HW % hw_tile == 0
    n_hw = HW // hw_tile
    inv_hw = 1.0 / float(HW)

    def kernel(x_ref, wc_ref, bc_ref, out_ref, pool_ref):
        j = pl.program_id(1)

        @pl.when(j == 0)
        def _():
            pool_ref[...] = jnp.zeros_like(pool_ref)

        w = wc_ref[...]                         # (F, C) bf16, resident
        b = bc_ref[...]                         # (F, 1) f32
        # One frame at a time: exactly one (F, hw_tile) f32 activation is live;
        # its pooled column is accumulated straight into pool_ref (VPU adds +
        # one XLU lane reduce) -- the GAP never touches the MXU.
        for fr in range(frb):                   # static slices
            xb = x_ref[pl.ds(fr * C, C), :]     # (C, hw_tile) bf16, lane-dense
            act = jnp.dot(w, xb, preferred_element_type=jnp.float32)  # MXU
            act = jnp.maximum(act + b, 0.0)     # bias + ReLU, f32 on the VPU
            pool_ref[:, fr:fr + 1] += jnp.sum(act, axis=1, keepdims=True)

        @pl.when(j == n_hw - 1)
        def _():
            # single finalize: one XLU transpose (F,frb)->(frb,F) + 1/HW scale
            out_ref[...] = jnp.transpose(pool_ref[...]) * inv_hw

    return pl.pallas_call(
        kernel,
        out_shape=jax.ShapeDtypeStruct((BTp, F), jnp.float32),
        grid=(BTp // frb, n_hw),                # reduction axis (HW chunks) last
        in_specs=[
            pl.BlockSpec((frb * C, hw_tile), lambda i, j: (i, j)),
            pl.BlockSpec((F, C), lambda i, j: (0, 0)),
            pl.BlockSpec((F, 1), lambda i, j: (0, 0)),
        ],
        out_specs=pl.BlockSpec((frb, F), lambda i, j: (i, 0)),
        scratch_shapes=[pltpu.VMEM((F, frb), jnp.float32)],
        compiler_params=pltpu.CompilerParams(
            dimension_semantics=("parallel", "arbitrary"),
            vmem_limit_bytes=32 * 1024 * 1024),
    )(x_2d, wc, bc)


# ----------------------------------------------------------------------------
# Kernel 2: LSTM (single layer, unidirectional) + classifier, single invocation.
#   x-projection hoisted out of the recurrence into one batched matmul writing
#   a 2-D (T*B, 4H) gates scratch; time loop is an in-kernel fori_loop; only
#   h_T feeds the classifier head (lstm_out[:, -1, :] == h_T).
# ----------------------------------------------------------------------------
def lstm_cls_forward(feats_2d, p, T, B):
    """feats_2d: (T*B, F) f32, time-major rows t*B+b -> (B, 1) f32 logits."""
    TB, F = feats_2d.shape
    assert TB == T * B
    H = p["w_hh_t"].shape[0]

    def kernel(x_ref, wih_ref, whh_ref, b_ref, w1_ref, b1_ref, w2_ref, b2_ref,
               out_ref, gx_ref):
        # --- hoisted input projection: all T timesteps in one batched matmul ---
        fe = x_ref[...].astype(jnp.bfloat16)                   # (T*B, F)
        gx_ref[...] = (jnp.dot(fe, wih_ref[...],
                               preferred_element_type=jnp.float32)
                       + b_ref[...])                           # (T*B, 4H), b_ih+b_hh

        whh = whh_ref[...]                                     # (H, 4H) bf16, resident

        def step(t, carry):
            h, c = carry                                       # f32 (B, H)
            row = pl.multiple_of(t * B, B)
            g = gx_ref[pl.ds(row, B), :] + jnp.dot(
                h.astype(jnp.bfloat16), whh, preferred_element_type=jnp.float32)
            # PyTorch gate order: i, f, g, o ; gate math stays f32 (v5e-safe)
            i = jax.nn.sigmoid(g[:, 0 * H:1 * H])
            f = jax.nn.sigmoid(g[:, 1 * H:2 * H])
            gg = jnp.tanh(g[:, 2 * H:3 * H])
            o = jax.nn.sigmoid(g[:, 3 * H:4 * H])
            c_new = f * c + i * gg
            h_new = o * jnp.tanh(c_new)
            return (h_new, c_new)

        h0 = jnp.zeros((B, H), jnp.float32)
        c0 = jnp.zeros((B, H), jnp.float32)
        # TODO(synk): at B=2 the recurrence is dominated by re-pushing the W_hh
        # RHS each step; the real lever is batching B>=8 sequences per call (or
        # MXU-resident RHS via pltpu.matmul_push_rhs/acc_lhs/pop).
        h_T, _ = lax.fori_loop(0, T, step, (h0, c0), unroll=T <= 32)

        # classifier: Linear -> ReLU -> Dropout(0.3) [identity at inference] -> Linear
        z = jnp.maximum(
            jnp.dot(h_T.astype(jnp.bfloat16), w1_ref[...],
                    preferred_element_type=jnp.float32) + b1_ref[...], 0.0)
        # final Linear(256, 1): VPU broadcast-mul + lane reduce (no N=1 matmul)
        out_ref[...] = (jnp.sum(z * w2_ref[...], axis=1, keepdims=True)
                        + b2_ref[...])

    return pl.pallas_call(
        kernel,
        out_shape=jax.ShapeDtypeStruct((B, 1), jnp.float32),
        scratch_shapes=[pltpu.VMEM((TB, 4 * H), jnp.float32)],  # hoisted gates_x
        compiler_params=pltpu.CompilerParams(vmem_limit_bytes=32 * 1024 * 1024),
    )(feats_2d, p["w_ih_t"], p["w_hh_t"], p["b_lstm"],
      p["w1_t"], p["b1"], p["w2"], p["b2"])


# ----------------------------------------------------------------------------
# Full forward (mirrors DeepfakeBaseline.forward)
# ----------------------------------------------------------------------------
def deepfake_forward(x, params, hw_tile=None):
    B, T, C, H, W = x.shape
    BT, HW = B * T, H * W
    F = params["wc"].shape[0]

    frb = _pick_frb(BT)
    pad = (-BT) % frb

    # frames stay in native (BT*C, HW) layout: pure reshape, no big transpose.
    x_2d = x.reshape(BT * C, HW).astype(jnp.bfloat16)
    if pad:
        x_2d = jnp.concatenate(
            [x_2d, jnp.zeros((pad * C, HW), x_2d.dtype)], axis=0)

    feats = backbone_forward(x_2d, params["wc"], params["bc"],
                             frb=frb, hw_tile=hw_tile)[:BT]        # (BT, F) f32
    # tiny (B*T*F floats) transpose to time-major 2-D rows for the LSTM kernel
    feats_2d = feats.reshape(B, T, F).transpose(1, 0, 2).reshape(T * B, F)
    out = lstm_cls_forward(feats_2d, params, T, B)                 # (B, 1)
    return out[:, 0]                                               # squeeze(1)


# ----------------------------------------------------------------------------
# Pure-JAX reference (mirrors the kernels' bf16-weight / f32-accumulate math)
# ----------------------------------------------------------------------------
def reference_forward(x, p):
    B, T, C, H, W = x.shape
    Hl = p["w_hh_t"].shape[0]
    xf = x.reshape(B * T, C, H * W).astype(jnp.bfloat16).astype(jnp.float32)
    wc = p["wc"].astype(jnp.float32)
    act = jnp.einsum("fc,nch->nfh", wc, xf) + p["bc"][None, :, :]
    feats = jnp.mean(jnp.maximum(act, 0.0), axis=2)                 # (BT, F)
    fe = feats.astype(jnp.bfloat16).astype(jnp.float32)
    gx = fe @ p["w_ih_t"].astype(jnp.float32) + p["b_lstm"]
    gx = gx.reshape(B, T, 4 * Hl)
    whh = p["w_hh_t"].astype(jnp.float32)
    h = jnp.zeros((B, Hl), jnp.float32)
    c = jnp.zeros((B, Hl), jnp.float32)
    for t in range(T):
        g = gx[:, t] + h.astype(jnp.bfloat16).astype(jnp.float32) @ whh
        i = jax.nn.sigmoid(g[:, 0 * Hl:1 * Hl])
        f = jax.nn.sigmoid(g[:, 1 * Hl:2 * Hl])
        gg = jnp.tanh(g[:, 2 * Hl:3 * Hl])
        o = jax.nn.sigmoid(g[:, 3 * Hl:4 * Hl])
        c = f * c + i * gg
        h = o * jnp.tanh(c)
    z = jnp.maximum(
        h.astype(jnp.bfloat16).astype(jnp.float32) @ p["w1_t"].astype(jnp.float32)
        + p["b1"], 0.0)
    out = jnp.sum(z * p["w2"], axis=1, keepdims=True) + p["b2"]
    return out[:, 0]


if __name__ == "__main__":
    key = jax.random.PRNGKey(0)
    ks = jax.random.split(key, 8)

    B, T, C, H, W = 2, 4, 3, 16, 16
    x = jax.random.normal(ks[0], (B, T, C, H, W), jnp.float32)

    Fb, Hl, Hc = F_BACKBONE, LSTM_HIDDEN, CLS_HIDDEN
    params = {
        # synthetic backbone 1x1 conv, stored (F, C) for the W @ x orientation
        "wc":     (0.10 * jax.random.normal(ks[1], (Fb, C))).astype(jnp.bfloat16),
        "bc":     jnp.zeros((Fb, 1), jnp.float32),
        # LSTM weights (PyTorch gate order i,f,g,o); b_lstm = b_ih + b_hh
        "w_ih_t": (0.05 * jax.random.normal(ks[2], (Fb, 4 * Hl))).astype(jnp.bfloat16),
        "w_hh_t": (0.05 * jax.random.normal(ks[3], (Hl, 4 * Hl))).astype(jnp.bfloat16),
        "b_lstm": (0.01 * jax.random.normal(ks[4], (1, 4 * Hl))).astype(jnp.float32),
        # classifier head (w2 kept in its natural PyTorch (1, 256) row layout)
        "w1_t":   (0.05 * jax.random.normal(ks[5], (Hl, Hc))).astype(jnp.bfloat16),
        "b1":     jnp.zeros((1, Hc), jnp.float32),
        "w2":     (0.05 * jax.random.normal(ks[6], (1, Hc))).astype(jnp.float32),
        "b2":     jnp.zeros((1, 1), jnp.float32),
    }

    # hw_tile=128 exercises the multi-chunk GAP accumulation path on 16x16 demo
    # frames; production frames should use the auto-picked tile (largest
    # multiple of 128 dividing HW, cap 8192) -- the streamed (FRB*C, hw_tile)
    # block is only ~48*hw_tile bf16 bytes, far below scoped VMEM on all gens.
    out = jax.block_until_ready(deepfake_forward(x, params, hw_tile=128))
    assert out.shape == (B,), out.shape
    assert bool(jnp.all(jnp.isfinite(out)))

    ref = reference_forward(x, params)
    assert jnp.allclose(out, ref, rtol=5e-2, atol=5e-2), (out, ref)

    print("KERNEL_OK")
</pallas_src>

<mosaic_0001>
module attributes {stable_mosaic.version = 11 : i64} {
  func.func @kernel(%arg0: i32, %arg1: i32, %arg2: memref<24x128xbf16, #tpu.memory_space<vmem>>, %arg3: memref<128x3xbf16, #tpu.memory_space<vmem>>, %arg4: memref<128x1xf32, #tpu.memory_space<vmem>>, %arg5: memref<8x128xf32, #tpu.memory_space<vmem>>, %arg6: memref<128x8xf32, #tpu.memory_space<vmem>>) attributes {dimension_semantics = [#tpu.dimension_semantics<parallel>, #tpu.dimension_semantics<arbitrary>], iteration_bounds = array<i64: 1, 2>, scalar_prefetch = 0 : i64, scratch_operands = 1 : i64, tpu.core_type = #tpu.core_type<tc>, window_params = [{transform_indices = @transform_0, window_bounds = array<i64: 24, 128>}, {pipeline_mode = #tpu.pipeline_mode<synchronous>, transform_indices = @transform_1, window_bounds = array<i64: 128, 3>}, {pipeline_mode = #tpu.pipeline_mode<synchronous>, transform_indices = @transform_2, window_bounds = array<i64: 128, 1>}, {transform_indices = @transform_3, window_bounds = array<i64: 8, 128>}]} {
    %c0_i32 = arith.constant 0 : i32
    %0 = arith.cmpi eq, %arg1, %c0_i32 : i32
    %1 = arith.extui %0 : i1 to i32
    %c0_i32_0 = arith.constant 0 : i32
    %2 = arith.cmpi ne, %1, %c0_i32_0 : i32
    scf.if %2 {
      %cst_64 = arith.constant 0.000000e+00 : f32
      %96 = vector.broadcast %cst_64 : f32 to vector<128x8xf32>
      %c0_65 = arith.constant 0 : index
      %c0_66 = arith.constant 0 : index
      %97 = vector.load %arg6[%c0_65, %c0_66] : memref<128x8xf32, #tpu.memory_space<vmem>>, vector<128x8xf32>
      tpu.vector_store %arg6[%c0_65, %c0_66], %96 {strides = array<i32>} : memref<128x8xf32, #tpu.memory_space<vmem>>, vector<128x8xf32>,
    } else {
    }
    %c0 = arith.constant 0 : index
    %c0_1 = arith.constant 0 : index
    %3 = vector.load %arg3[%c0, %c0_1] : memref<128x3xbf16, #tpu.memory_space<vmem>>, vector<128x3xbf16>
    %c0_2 = arith.constant 0 : index
    %c0_3 = arith.constant 0 : index
    %4 = vector.load %arg4[%c0_2, %c0_3] : memref<128x1xf32, #tpu.memory_space<vmem>>, vector<128x1xf32>
    %c0_4 = arith.constant 0 : index
    %c0_5 = arith.constant 0 : index
    %5 = vector.load %arg2[%c0_4, %c0_5] : memref<24x128xbf16, #tpu.memory_space<vmem>>, vector<3x128xbf16>
    %cst = arith.constant dense<0.000000e+00> : vector<128x128xf32>
    %6 = tpu.matmul %3, %5, %cst {dimension_numbers = #tpu.dot_dimension_numbers<[1], [0], [0], [1], [0, 0, 1, 1], [], []>} : vector<128x3xbf16>, vector<3x128xbf16>, vector<128x128xf32> -> vector<128x128xf32>
    %7 = vector.broadcast %4 : vector<128x1xf32> to vector<128x128xf32>
    %8 = arith.addf %6, %7 : vector<128x128xf32>
    %cst_6 = arith.constant 0.000000e+00 : f32
    %9 = vector.broadcast %cst_6 : f32 to vector<128x128xf32>
    %10 = arith.maximumf %8, %9 : vector<128x128xf32>
    %c0_7 = arith.constant 0 : index
    %c0_8 = arith.constant 0 : index
    %11 = vector.load %arg6[%c0_7, %c0_8] : memref<128x8xf32, #tpu.memory_space<vmem>>, vector<128x1xf32>
    %cst_9 = arith.constant dense<0.000000e+00> : vector<128xf32>
    %12 = vector.multi_reduction <add>, %10, %cst_9 [1] : vector<128x128xf32> to vector<128xf32>
    %13 = vector.shape_cast %12 : vector<128xf32> to vector<128x1xf32>
    %14 = arith.addf %11, %13 : vector<128x1xf32>
    %c0_10 = arith.constant 0 : index
    %c0_11 = arith.constant 0 : index
    %15 = vector.load %arg6[%c0_10, %c0_11] : memref<128x8xf32, #tpu.memory_space<vmem>>, vector<128x1xf32>
    tpu.vector_store %arg6[%c0_10, %c0_11], %14 {strides = array<i32>} : memref<128x8xf32, #tpu.memory_space<vmem>>, vector<128x1xf32>,
    %c3 = arith.constant 3 : index
    %c0_12 = arith.constant 0 : index
    %16 = vector.load %arg2[%c3, %c0_12] : memref<24x128xbf16, #tpu.memory_space<vmem>>, vector<3x128xbf16>
    %cst_13 = arith.constant dense<0.000000e+00> : vector<128x128xf32>
    %17 = tpu.matmul %3, %16, %cst_13 {dimension_numbers = #tpu.dot_dimension_numbers<[1], [0], [0], [1], [0, 0, 1, 1], [], []>} : vector<128x3xbf16>, vector<3x128xbf16>, vector<128x128xf32> -> vector<128x128xf32>
    %18 = vector.broadcast %4 : vector<128x1xf32> to vector<128x128xf32>
    %19 = arith.addf %17, %18 : vector<128x128xf32>
    %cst_14 = arith.constant 0.000000e+00 : f32
    %20 = vector.broadcast %cst_14 : f32 to vector<128x128xf32>
    %21 = arith.maximumf %19, %20 : vector<128x128xf32>
    %c0_15 = arith.constant 0 : index
    %c1 = arith.constant 1 : index
    %22 = vector.load %arg6[%c0_15, %c1] : memref<128x8xf32, #tpu.memory_space<vmem>>, vector<128x1xf32>
    %cst_16 = arith.constant dense<0.000000e+00> : vector<128xf32>
    %23 = vector.multi_reduction <add>, %21, %cst_16 [1] : vector<128x128xf32> to vector<128xf32>
    %24 = vector.shape_cast %23 : vector<128xf32> to vector<128x1xf32>
    %25 = arith.addf %22, %24 : vector<128x1xf32>
    %c0_17 = arith.constant 0 : index
    %c1_18 = arith.constant 1 : index
    %26 = vector.load %arg6[%c0_17, %c1_18] : memref<128x8xf32, #tpu.memory_space<vmem>>, vector<128x1xf32>
    tpu.vector_store %arg6[%c0_17, %c1_18], %25 {strides = array<i32>} : memref<128x8xf32, #tpu.memory_space<vmem>>, vector<128x1xf32>,
    %c6 = arith.constant 6 : index
    %c0_19 = arith.constant 0 : index
    %27 = vector.load %arg2[%c6, %c0_19] : memref<24x128xbf16, #tpu.memory_space<vmem>>, vector<3x128xbf16>
    %cst_20 = arith.constant dense<0.000000e+00> : vector<128x128xf32>
    %28 = tpu.matmul %3, %27, %cst_20 {dimension_numbers = #tpu.dot_dimension_numbers<[1], [0], [0], [1], [0, 0, 1, 1], [], []>} : vector<128x3xbf16>, vector<3x128xbf16>, vector<128x128xf32> -> vector<128x128xf32>
    %29 = vector.broadcast %4 : vector<128x1xf32> to vector<128x128xf32>
    %30 = arith.addf %28, %29 : vector<128x128xf32>
    %cst_21 = arith.constant 0.000000e+00 : f32
    %31 = vector.broadcast %cst_21 : f32 to vector<128x128xf32>
    %32 = arith.maximumf %30, %31 : vector<128x128xf32>
    %c0_22 = arith.constant 0 : index
    %c2 = arith.constant 2 : index
    %33 = vector.load %arg6[%c0_22, %c2] : memref<128x8xf32, #tpu.memory_space<vmem>>, vector<128x1xf32>
    %cst_23 = arith.constant dense<0.000000e+00> : vector<128xf32>
    %34 = vector.multi_reduction <add>, %32, %cst_23 [1] : vector<128x128xf32> to vector<128xf32>
    %35 = vector.shape_cast %34 : vector<128xf32> to vector<128x1xf32>
    %36 = arith.addf %33, %35 : vector<128x1xf32>
    %c0_24 = arith.constant 0 : index
    %c2_25 = arith.constant 2 : index
    %37 = vector.load %arg6[%c0_24, %c2_25] : memref<128x8xf32, #tpu.memory_space<vmem>>, vector<128x1xf32>
    tpu.vector_store %arg6[%c0_24, %c2_25], %36 {strides = array<i32>} : memref<128x8xf32, #tpu.memory_space<vmem>>, vector<128x1xf32>,
    %c9 = arith.constant 9 : index
    %c0_26 = arith.constant 0 : index
    %38 = vector.load %arg2[%c9, %c0_26] : memref<24x128xbf16, #tpu.memory_space<vmem>>, vector<3x128xbf16>
    %cst_27 = arith.constant dense<0.000000e+00> : vector<128x128xf32>
    %39 = tpu.matmul %3, %38, %cst_27 {dimension_numbers = #tpu.dot_dimension_numbers<[1], [0], [0], [1], [0, 0, 1, 1], [], []>} : vector<128x3xbf16>, vector<3x128xbf16>, vector<128x128xf32> -> vector<128x128xf32>
    %40 = vector.broadcast %4 : vector<128x1xf32> to vector<128x128xf32>
    %41 = arith.addf %39, %40 : vector<128x128xf32>
    %cst_28 = arith.constant 0.000000e+00 : f32
    %42 = vector.broadcast %cst_28 : f32 to vector<128x128xf32>
    %43 = arith.maximumf %41, %42 : vector<128x128xf32>
    %c0_29 = arith.constant 0 : index
    %c3_30 = arith.constant 3 : index
    %44 = vector.load %arg6[%c0_29, %c3_30] : memref<128x8xf32, #tpu.memory_space<vmem>>, vector<128x1xf32>
    %cst_31 = arith.constant dense<0.000000e+00> : vector<128xf32>
    %45 = vector.multi_reduction <add>, %43, %cst_31 [1] : vector<128x128xf32> to vector<128xf32>
    %46 = vector.shape_cast %45 : vector<128xf32> to vector<128x1xf32>
    %47 = arith.addf %44, %46 : vector<128x1xf32>
    %c0_32 = arith.constant 0 : index
    %c3_33 = arith.constant 3 : index
    %48 = vector.load %arg6[%c0_32, %c3_33] : memref<128x8xf32, #tpu.memory_space<vmem>>, vector<128x1xf32>
    tpu.vector_store %arg6[%c0_32, %c3_33], %47 {strides = array<i32>} : memref<128x8xf32, #tpu.memory_space<vmem>>, vector<128x1xf32>,
    %c12 = arith.constant 12 : index
    %c0_34 = arith.constant 0 : index
    %49 = vector.load %arg2[%c12, %c0_34] : memref<24x128xbf16, #tpu.memory_space<vmem>>, vector<3x128xbf16>
    %cst_35 = arith.constant dense<0.000000e+00> : vector<128x128xf32>
    %50 = tpu.matmul %3, %49, %cst_35 {dimension_numbers = #tpu.dot_dimension_numbers<[1], [0], [0], [1], [0, 0, 1, 1], [], []>} : vector<128x3xbf16>, vector<3x128xbf16>, vector<128x128xf32> -> vector<128x128xf32>
    %51 = vector.broadcast %4 : vector<128x1xf32> to vector<128x128xf32>
    %52 = arith.addf %50, %51 : vector<128x128xf32>
    %cst_36 = arith.constant 0.000000e+00 : f32
    %53 = vector.broadcast %cst_36 : f32 to vector<128x128xf32>
    %54 = arith.maximumf %52, %53 : vector<128x128xf32>
    %c0_37 = arith.constant 0 : index
    %c4 = arith.constant 4 : index
    %55 = vector.load %arg6[%c0_37, %c4] : memref<128x8xf32, #tpu.memory_space<vmem>>, vector<128x1xf32>
    %cst_38 = arith.constant dense<0.000000e+00> : vector<128xf32>
    %56 = vector.multi_reduction <add>, %54, %cst_38 [1] : vector<128x128xf32> to vector<128xf32>
    %57 = vector.shape_cast %56 : vector<128xf32> to vector<128x1xf32>
    %58 = arith.addf %55, %57 : vector<128x1xf32>
    %c0_39 = arith.constant 0 : index
    %c4_40 = arith.constant 4 : index
    %59 = vector.load %arg6[%c0_39, %c4_40] : memref<128x8xf32, #tpu.memory_space<vmem>>, vector<128x1xf32>
    tpu.vector_store %arg6[%c0_39, %c4_40], %58 {strides = array<i32>} : memref<128x8xf32, #tpu.memory_space<vmem>>, vector<128x1xf32>,
    %c15 = arith.constant 15 : index
    %c0_41 = arith.constant 0 : index
    %60 = vector.load %arg2[%c15, %c0_41] : memref<24x128xbf16, #tpu.memory_space<vmem>>, vector<3x128xbf16>
    %cst_42 = arith.constant dense<0.000000e+00> : vector<128x128xf32>
    %61 = tpu.matmul %3, %60, %cst_42 {dimension_numbers = #tpu.dot_dimension_numbers<[1], [0], [0], [1], [0, 0, 1, 1], [], []>} : vector<128x3xbf16>, vector<3x128xbf16>, vector<128x128xf32> -> vector<128x128xf32>
    %62 = vector.broadcast %4 : vector<128x1xf32> to vector<128x128xf32>
    %63 = arith.addf %61, %62 : vector<128x128xf32>
    %cst_43 = arith.constant 0.000000e+00 : f32
    %64 = vector.broadcast %cst_43 : f32 to vector<128x128xf32>
    %65 = arith.maximumf %63, %64 : vector<128x128xf32>
    %c0_44 = arith.constant 0 : index
    %c5 = arith.constant 5 : index
    %66 = vector.load %arg6[%c0_44, %c5] : memref<128x8xf32, #tpu.memory_space<vmem>>, vector<128x1xf32>
    %cst_45 = arith.constant dense<0.000000e+00> : vector<128xf32>
    %67 = vector.multi_reduction <add>, %65, %cst_45 [1] : vector<128x128xf32> to vector<128xf32>
    %68 = vector.shape_cast %67 : vector<128xf32> to vector<128x1xf32>
    %69 = arith.addf %66, %68 : vector<128x1xf32>
    %c0_46 = arith.constant 0 : index
    %c5_47 = arith.constant 5 : index
    %70 = vector.load %arg6[%c0_46, %c5_47] : memref<128x8xf32, #tpu.memory_space<vmem>>, vector<128x1xf32>
    tpu.vector_store %arg6[%c0_46, %c5_47], %69 {strides = array<i32>} : memref<128x8xf32, #tpu.memory_space<vmem>>, vector<128x1xf32>,
    %c18 = arith.constant 18 : index
    %c0_48 = arith.constant 0 : index
    %71 = vector.load %arg2[%c18, %c0_48] : memref<24x128xbf16, #tpu.memory_space<vmem>>, vector<3x128xbf16>
    %cst_49 = arith.constant dense<0.000000e+00> : vector<128x128xf32>
    %72 = tpu.matmul %3, %71, %cst_49 {dimension_numbers = #tpu.dot_dimension_numbers<[1], [0], [0], [1], [0, 0, 1, 1], [], []>} : vector<128x3xbf16>, vector<3x128xbf16>, vector<128x128xf32> -> vector<128x128xf32>
    %73 = vector.broadcast %4 : vector<128x1xf32> to vector<128x128xf32>
    %74 = arith.addf %72, %73 : vector<128x128xf32>
    %cst_50 = arith.constant 0.000000e+00 : f32
    %75 = vector.broadcast %cst_50 : f32 to vector<128x128xf32>
    %76 = arith.maximumf %74, %75 : vector<128x128xf32>
    %c0_51 = arith.constant 0 : index
    %c6_52 = arith.constant 6 : index
    %77 = vector.load %arg6[%c0_51, %c6_52] : memref<128x8xf32, #tpu.memory_space<vmem>>, vector<128x1xf32>
    %cst_53 = arith.constant dense<0.000000e+00> : vector<128xf32>
    %78 = vector.multi_reduction <add>, %76, %cst_53 [1] : vector<128x128xf32> to vector<128xf32>
    %79 = vector.shape_cast %78 : vector<128xf32> to vector<128x1xf32>
    %80 = arith.addf %77, %79 : vector<128x1xf32>
    %c0_54 = arith.constant 0 : index
    %c6_55 = arith.constant 6 : index
    %81 = vector.load %arg6[%c0_54, %c6_55] : memref<128x8xf32, #tpu.memory_space<vmem>>, vector<128x1xf32>
    tpu.vector_store %arg6[%c0_54, %c6_55], %80 {strides = array<i32>} : memref<128x8xf32, #tpu.memory_space<vmem>>, vector<128x1xf32>,
    %c21 = arith.constant 21 : index
    %c0_56 = arith.constant 0 : index
    %82 = vector.load %arg2[%c21, %c0_56] : memref<24x128xbf16, #tpu.memory_space<vmem>>, vector<3x128xbf16>
    %cst_57 = arith.constant dense<0.000000e+00> : vector<128x128xf32>
    %83 = tpu.matmul %3, %82, %cst_57 {dimension_numbers = #tpu.dot_dimension_numbers<[1], [0], [0], [1], [0, 0, 1, 1], [], []>} : vector<128x3xbf16>, vector<3x128xbf16>, vector<128x128xf32> -> vector<128x128xf32>
    %84 = vector.broadcast %4 : vector<128x1xf32> to vector<128x128xf32>
    %85 = arith.addf %83, %84 : vector<128x128xf32>
    %cst_58 = arith.constant 0.000000e+00 : f32
    %86 = vector.broadcast %cst_58 : f32 to vector<128x128xf32>
    %87 = arith.maximumf %85, %86 : vector<128x128xf32>
    %c0_59 = arith.constant 0 : index
    %c7 = arith.constant 7 : index
    %88 = vector.load %arg6[%c0_59, %c7] : memref<128x8xf32, #tpu.memory_space<vmem>>, vector<128x1xf32>
    %cst_60 = arith.constant dense<0.000000e+00> : vector<128xf32>
    %89 = vector.multi_reduction <add>, %87, %cst_60 [1] : vector<128x128xf32> to vector<128xf32>
    %90 = vector.shape_cast %89 : vector<128xf32> to vector<128x1xf32>
    %91 = arith.addf %88, %90 : vector<128x1xf32>
    %c0_61 = arith.constant 0 : index
    %c7_62 = arith.constant 7 : index
    %92 = vector.load %arg6[%c0_61, %c7_62] : memref<128x8xf32, #tpu.memory_space<vmem>>, vector<128x1xf32>
    tpu.vector_store %arg6[%c0_61, %c7_62], %91 {strides = array<i32>} : memref<128x8xf32, #tpu.memory_space<vmem>>, vector<128x1xf32>,
    %c1_i32 = arith.constant 1 : i32
    %93 = arith.cmpi eq, %arg1, %c1_i32 : i32
    %94 = arith.extui %93 : i1 to i32
    %c0_i32_63 = arith.constant 0 : i32
    %95 = arith.cmpi ne, %94, %c0_i32_63 : i32
    scf.if %95 {
      %c0_64 = arith.constant 0 : index
      %c0_65 = arith.constant 0 : index
      %96 = vector.load %arg6[%c0_64, %c0_65] : memref<128x8xf32, #tpu.memory_space<vmem>>, vector<128x8xf32>
      %97 = tpu.transpose %96, [1, 0] : vector<128x8xf32> -> vector<8x128xf32>
      %cst_66 = arith.constant 3.906250e-03 : f32
      %98 = vector.broadcast %cst_66 : f32 to vector<8x128xf32>
      %99 = arith.mulf %97, %98 : vector<8x128xf32>
      %c0_67 = arith.constant 0 : index
      %c0_68 = arith.constant 0 : index
      %100 = vector.load %arg5[%c0_67, %c0_68] : memref<8x128xf32, #tpu.memory_space<vmem>>, vector<8x128xf32>
      tpu.vector_store %arg5[%c0_67, %c0_68], %99 {strides = array<i32>} : memref<8x128xf32, #tpu.memory_space<vmem>>, vector<8x128xf32>,
    } else {
    }
    return
  }
  func.func @transform_0(%arg0: i32, %arg1: i32) -> (i32, i32) {
    %c0_i32 = arith.constant 0 : i32
    return %arg0, %arg1 : i32, i32
  }
  func.func @transform_1(%arg0: i32, %arg1: i32) -> (i32, i32) {
    %c0_i32 = arith.constant 0 : i32
    %c0_i32_0 = arith.constant 0 : i32
    %c0_i32_1 = arith.constant 0 : i32
    return %c0_i32, %c0_i32_0 : i32, i32
  }
  func.func @transform_2(%arg0: i32, %arg1: i32) -> (i32, i32) {
    %c0_i32 = arith.constant 0 : i32
    %c0_i32_0 = arith.constant 0 : i32
    %c0_i32_1 = arith.constant 0 : i32
    return %c0_i32, %c0_i32_0 : i32, i32
  }
  func.func @transform_3(%arg0: i32, %arg1: i32) -> (i32, i32) {
    %c0_i32 = arith.constant 0 : i32
    %c0_i32_0 = arith.constant 0 : i32
    return %arg0, %c0_i32 : i32, i32
  }
}

</mosaic_0001>

<llo_original>
// kernel: tpu_custom_call.1
$region0: #{tpu_custom_call.1}
  #allocation0 [shape = 'u32[]', space=smem, size = 0x4, offset = 0x4, fixed_abs, tag = 'smem constant byte address 0x4 - core index']
  #allocation1 [shape = 'u32[72,128]{1,0:T(1,128)}', space=vmem, size = 0x9000, scoped, tag = 'internal scratch']
  #allocation2 [shape = 'f32[128,8]{1,0:T(8,128)}', space=vmem, size = 0x10000, scoped, tag = 'scratch operand']
  %s0 = inlined_call_operand.vmem [shape: bf16[24,256], index: 0, kind: input, shape index: {}]
  %s1 = inlined_call_operand.vmem [shape: bf16[128,3], index: 1, kind: input, shape index: {}]
  %s2 = inlined_call_operand.vmem [shape: f32[128,1], index: 2, kind: input, shape index: {}]
  %s3 = inlined_call_operand.hbm [shape: f32[8,128], index: 3, kind: output, shape index: {}]
  %s4 = sld [smem:[#allocation0]]
  $region94: #{tpu_custom_call.1} parent=0
    _
  %s6 = ssub.s32 1, %s4
  %s7 = scalar_select 0, %s6, %s4
  $region1: #{tpu_custom_call.1} parent=0
    #allocation3 [shape = 'u8[12288]{0}', space=vmem, size = 0x3000, scoped, tag = 'input window, operand 0']
    #allocation4 [shape = 'u8[4096]{0}', space=vmem, size = 0x1000, scoped, tag = 'output window, operand 0, single buffered']
    #allocation5 [shape = 's32[2]{0}', space=sflag, size = 0x8, scoped, tag = 'scoped memory for tpu_custom_call.1']
    %8 = vsyncpa [#allocation5], 0
    loop: start=0, step=1, limit=4
    $region2: #{tpu_custom_call.1} parent=1 // loop_pre_header
      _
    $region3: #{tpu_custom_call.1} parent=1 // loop_header
      %s10 = sphi 0, %s14
      %p11 = scmp.ge.s32.totalorder %s10, 4
      %s17 = sphi 0, %s29
      %s18 = sphi 0, %s25
      %s19 = sphi 0, %s17
      %s20 = sphi 0, %s18
      %s21 = sphi 0, %s19
      %s22 = sphi 0, %s20
      %s34 = sphi 0, %s36
      %s37 = sphi 0, %s34
      %s38 = sphi 0, %s37
      %s54 = sphi 0, %s38
      %s58 = sphi 0, %s58
      %s60 = sphi 0, %s58
      %s61 = sphi 0, %s60
      %s75 = sphi 0, %s61
      %s79 = sphi 0, %s79
      %s81 = sphi 0, %s79
      %s82 = sphi 0, %s81
      %s96 = sphi 0, %s82
      %s102 = sphi 0, %s104
      %s105 = sphi 0, %s102
      %s106 = sphi 0, %s105
      %s122 = sphi 0, %s106
    $region4: #{tpu_custom_call.1} parent=1 // loop_header_branch
      %13 = sbr.rel (%p11) target = $region8
    $region5: #{tpu_custom_call.1} parent=1 // loop_body
      %s15 = ssub.s32 %s10, 1
      %s16 = ssub.s32 %s10, 2
      %s23 = sadd.s32 1, %s18
      %p24 = scmp.ge.s32.totalorder %s23, 2
      %s25 = scalar_select %p24, 0, %s23
      %s26 = sadd.s32 1, %s17
      %s27 = scalar_select %p24, %s26, %s17
      %p28 = scmp.ge.s32.totalorder %s27, 1
      %s29 = scalar_select %p28, 0, %s27
      %s30 = ssub.s32 %s17, %s29
      %s31 = ssub.s32 %s18, %s25
      %s32 = sor.u32 %s30, %s31
      %p33 = scmp.eq.s32.totalorder %s32, 0
      %s35 = sadd.s32 %s34, 1
      %s36 = scalar_select %p33, %s34, %s35
      %p39 = pneg %p33
      %p40 = scmp.eq.s32.totalorder %s10, 1
      %p41 = por %p39, %p40
      %p42 = scmp.ne.s32.totalorder %s34, %s37
      %p43 = scmp.eq.s32.totalorder %s10, 0
      %p44 = por %p42, %p43
      %p45 = scmp.ne.s32.totalorder %s34, %s37
      %p46 = scmp.eq.s32.totalorder %s15, 1
      %p47 = por %p45, %p46
      %p48 = scmp.ne.s32.totalorder %s37, %s38
      %p49 = scmp.eq.s32.totalorder %s15, 0
      %p50 = por %p48, %p49
      %p51 = scmp.ne.s32.totalorder %s37, %s38
      %p52 = scmp.eq.s32.totalorder %s16, 1
      %p53 = por %p51, %p52
      %p55 = scmp.ne.s32.totalorder %s38, %s54
      %p56 = scmp.eq.s32.totalorder %s16, 0
      %p57 = por %p55, %p56
      %s59 = sadd.s32 %s58, 1
      %p62 = scmp.eq.s32.totalorder %s10, 1
      %p63 = scmp.ne.s32.totalorder %s58, %s60
      %p64 = scmp.eq.s32.totalorder %s10, 0
      %p65 = por %p63, %p64
      %p66 = scmp.ne.s32.totalorder %s58, %s60
      %p67 = scmp.eq.s32.totalorder %s15, 1
      %p68 = por %p66, %p67
      %p69 = scmp.ne.s32.totalorder %s60, %s61
      %p70 = scmp.eq.s32.totalorder %s15, 0
      %p71 = por %p69, %p70
      %p72 = scmp.ne.s32.totalorder %s60, %s61
      %p73 = scmp.eq.s32.totalorder %s16, 1
      %p74 = por %p72, %p73
      %p76 = scmp.ne.s32.totalorder %s61, %s75
      %p77 = scmp.eq.s32.totalorder %s16, 0
      %p78 = por %p76, %p77
      %s80 = sadd.s32 %s79, 1
      %p83 = scmp.eq.s32.totalorder %s10, 1
      %p84 = scmp.ne.s32.totalorder %s79, %s81
      %p85 = scmp.eq.s32.totalorder %s10, 0
      %p86 = por %p84, %p85
      %p87 = scmp.ne.s32.totalorder %s79, %s81
      %p88 = scmp.eq.s32.totalorder %s15, 1
      %p89 = por %p87, %p88
      %p90 = scmp.ne.s32.totalorder %s81, %s82
      %p91 = scmp.eq.s32.totalorder %s15, 0
      %p92 = por %p90, %p91
      %p93 = scmp.ne.s32.totalorder %s81, %s82
      %p94 = scmp.eq.s32.totalorder %s16, 1
      %p95 = por %p93, %p94
      %p97 = scmp.ne.s32.totalorder %s82, %s96
      %p98 = scmp.eq.s32.totalorder %s16, 0
      %p99 = por %p97, %p98
      %s100 = ssub.s32 %s17, %s29
      %p101 = scmp.eq.s32.totalorder %s100, 0
      %s103 = sadd.s32 %s102, 1
      %s104 = scalar_select %p101, %s102, %s103
      %p107 = pneg %p101
      %p108 = scmp.eq.s32.totalorder %s10, 1
      %p109 = por %p107, %p108
      %p110 = scmp.ne.s32.totalorder %s102, %s105
      %p111 = scmp.eq.s32.totalorder %s10, 0
      %p112 = por %p110, %p111
      %p113 = scmp.ne.s32.totalorder %s102, %s105
      %p114 = scmp.eq.s32.totalorder %s15, 1
      %p115 = por %p113, %p114
      %p116 = scmp.ne.s32.totalorder %s105, %s106
      %p117 = scmp.eq.s32.totalorder %s15, 0
      %p118 = por %p116, %p117
      %p119 = scmp.ne.s32.totalorder %s105, %s106
      %p120 = scmp.eq.s32.totalorder %s16, 1
      %p121 = por %p119, %p120
      %p123 = scmp.ne.s32.totalorder %s106, %s122
      %p124 = scmp.eq.s32.totalorder %s16, 0
      %p125 = por %p123, %p124
      %p126 = scmp.le.s32.totalorder 1, %s10
      %p127 = scmp.lt.s32.totalorder %s10, 3
      %p128 = pnand %p126, %p127
      %p129 = pneg %p128
      // Predicated region
      $region9: #{tpu_custom_call.1} parent=5 // pred_check
        _
      $region10: #{tpu_custom_call.1} parent=5 // pred_check_branch
        %131 = sbr.rel (%p128) target = $region12
      $region11: #{tpu_custom_call.1} parent=5 // pred_region
        %s132 = ssub.s32 %s10, 1
        // Predicated region
        $region13: #{tpu_custom_call.1} parent=11 // pred_check
          %p133 = pneg %p71
        $region14: #{tpu_custom_call.1} parent=11 // pred_check_branch
          %135 = sbr.rel (%p133) target = $region16
        $region15: #{tpu_custom_call.1} parent=11 // pred_region
          _
        $region16: #{tpu_custom_call.1} parent=11 // pred_fallthru
          _
        // Predicated region
        $region17: #{tpu_custom_call.1} parent=11 // pred_check
          %p136 = pneg %p92
        $region18: #{tpu_custom_call.1} parent=11 // pred_check_branch
          %138 = sbr.rel (%p136) target = $region20
        $region19: #{tpu_custom_call.1} parent=11 // pred_region
          _
        $region20: #{tpu_custom_call.1} parent=11 // pred_fallthru
          _
      $region12: #{tpu_custom_call.1} parent=5 // pred_fallthru
        _
      %p139 = scmp.lt.s32.totalorder %s10, 2
      // Predicated region
      $region21: #{tpu_custom_call.1} parent=5 // pred_check
        %p140 = pneg %p139
      $region22: #{tpu_custom_call.1} parent=5 // pred_check_branch
        %142 = sbr.rel (%p140) target = $region24
      $region23: #{tpu_custom_call.1} parent=5 // pred_region
        // Predicated region
        $region25: #{tpu_custom_call.1} parent=23 // pred_check
          %p143 = pneg %p44
        $region26: #{tpu_custom_call.1} parent=23 // pred_check_branch
          %145 = sbr.rel (%p143) target = $region28
        $region27: #{tpu_custom_call.1} parent=23 // pred_region
          %s146 = sand.u32 %s34, 1
          %s147 = sand.u32 %s34, 1
          %s148 = smul.addr %s147, 12
          %s149 = scalar_lea.vmem [#allocation3], %s148
          %s150 = smul.u32 3, %s17
          %s151 = smul.addr %s150, 2
          %s152 = sadd.s32 %s18, %s151
          %s153 = smul.addr %s152, 4
          %s154 = scalar_lea.vmem %s0, %s153
          // Predicated region
          $region29: #{tpu_custom_call.1} parent=27 // pred_check
            _
          $region30: #{tpu_custom_call.1} parent=27 // pred_check_branch
            %156 = sbr.rel (0) target = $region32
          $region31: #{tpu_custom_call.1} parent=27 // pred_region
            // Predicated region
            $region33: #{tpu_custom_call.1} parent=31 // pred_check
              _
            $region34: #{tpu_custom_call.1} parent=31 // pred_check_branch
              %158 = sbr.rel target = $region36
            $region35: #{tpu_custom_call.1} parent=31 // pred_region
              // Predicated region
              $region48: #{tpu_custom_call.1} parent=35 // pred_check
                _
              $region49: #{tpu_custom_call.1} parent=35 // pred_check_branch
                %178 = sbr.rel (0) target = $region51
              $region50: #{tpu_custom_call.1} parent=35 // pred_region
                loop: start=0, step=1, limit=1
                $region52: #{tpu_custom_call.1} parent=50 // loop_pre_header
                  _
                $region53: #{tpu_custom_call.1} parent=50 // loop_header
                  %s180 = sphi 0, %s184
                  %p181 = scmp.ge.s32.totalorder %s180, 1
                  %s185 = sphi %s154, %s154
                  %s186 = sphi %s149, %s149
                $region54: #{tpu_custom_call.1} parent=50 // loop_header_branch
                  %183 = sbr.rel (%p181) target = $region58
                $region55: #{tpu_custom_call.1} parent=50 // loop_body
                  _
                $region56: #{tpu_custom_call.1} parent=50 // loop_footer
                  %s184 = sadd.s32 1, %s180
                $region57: #{tpu_custom_call.1} parent=50 // loop_footer_branch
                  %179 = sbr.rel target = $region53
                $region58: #{tpu_custom_call.1} parent=50 // loop_exit
                  _
                %s188 = ssub.s32 16, 1
                loop: start=0, step=1, limit=1
                $region59: #{tpu_custom_call.1} parent=50 // loop_pre_header
                  _
                $region60: #{tpu_custom_call.1} parent=50 // loop_header
                  %s190 = sphi 0, %s194
                  %p191 = scmp.ge.s32.totalorder %s190, 1
                  %s195 = sphi %s154, %s154
                  %s196 = sphi %s149, %s149
                $region61: #{tpu_custom_call.1} parent=50 // loop_header_branch
                  %193 = sbr.rel (%p191) target = $region65
                $region62: #{tpu_custom_call.1} parent=50 // loop_body
                  %v197 = vld [vmem:[%s195] sm:%s188]
                  %198 = vst [vmem:[%s196] sm:%s188] %v197
                  %v199 = vld [vmem:[%s195 + $0x8] sm:%s188]
                  %200 = vst [vmem:[%s196 + $0x4] sm:%s188] %v199
                  %v201 = vld [vmem:[%s195 + $0x10] sm:%s188]
                  %202 = vst [vmem:[%s196 + $0x8] sm:%s188] %v201
                $region63: #{tpu_custom_call.1} parent=50 // loop_footer
                  %s194 = sadd.s32 1, %s190
                $region64: #{tpu_custom_call.1} parent=50 // loop_footer_branch
                  %189 = sbr.rel target = $region60
                $region65: #{tpu_custom_call.1} parent=50 // loop_exit
                  _
              $region51: #{tpu_custom_call.1} parent=35 // pred_fallthru
                _
            $region36: #{tpu_custom_call.1} parent=31 // pred_fallthru
              _
            // Predicated region
            $region37: #{tpu_custom_call.1} parent=31 // pred_check
              _
            $region38: #{tpu_custom_call.1} parent=31 // pred_check_branch
              %160 = sbr.rel (0) target = $region40
            $region39: #{tpu_custom_call.1} parent=31 // pred_region
              %s162 = ssub.s32 16, 1
              loop: start=0, step=1, limit=1
              $region41: #{tpu_custom_call.1} parent=39 // loop_pre_header
                _
              $region42: #{tpu_custom_call.1} parent=39 // loop_header
                %s164 = sphi 0, %s168
                %p165 = scmp.ge.s32.totalorder %s164, 1
                %s169 = sphi %s154, %s154
                %s170 = sphi %s149, %s149
              $region43: #{tpu_custom_call.1} parent=39 // loop_header_branch
                %167 = sbr.rel (%p165) target = $region47
              $region44: #{tpu_custom_call.1} parent=39 // loop_body
                %v171 = vld [vmem:[%s169] sm:%s162]
                %172 = vst [vmem:[%s170] sm:%s162] %v171
                %v173 = vld [vmem:[%s169 + $0x8] sm:%s162]
                %174 = vst [vmem:[%s170 + $0x4] sm:%s162] %v173
                %v175 = vld [vmem:[%s169 + $0x10] sm:%s162]
                %176 = vst [vmem:[%s170 + $0x8] sm:%s162] %v175
              $region45: #{tpu_custom_call.1} parent=39 // loop_footer
                %s168 = sadd.s32 1, %s164
              $region46: #{tpu_custom_call.1} parent=39 // loop_footer_branch
                %163 = sbr.rel target = $region42
              $region47: #{tpu_custom_call.1} parent=39 // loop_exit
                _
            $region40: #{tpu_custom_call.1} parent=31 // pred_fallthru
              _
          $region32: #{tpu_custom_call.1} parent=27 // pred_fallthru
            _
          %203 = vnop
        $region28: #{tpu_custom_call.1} parent=23 // pred_fallthru
          _
      $region24: #{tpu_custom_call.1} parent=5 // pred_fallthru
        _
      %p204 = scmp.le.s32.totalorder 1, %s10
      %p205 = scmp.lt.s32.totalorder %s10, 3
      %p206 = pnand %p204, %p205
      %p207 = pneg %p206
      // Predicated region
      $region66: #{tpu_custom_call.1} parent=5 // pred_check
        _
      $region67: #{tpu_custom_call.1} parent=5 // pred_check_branch
        %209 = sbr.rel (%p206) target = $region69
      $region68: #{tpu_custom_call.1} parent=5 // pred_region
        %s210 = ssub.s32 %s10, 1
        %s211 = sand.u32 %s37, 1
        %s212 = sand.u32 %s37, 1
        %s213 = smul.addr %s212, 12
        %s214 = scalar_lea.vmem [#allocation3], %s213
        // Predicated region
        $region70: #{tpu_custom_call.1} parent=68 // pred_check
          %p215 = pneg %p50
        $region71: #{tpu_custom_call.1} parent=68 // pred_check_branch
          %217 = sbr.rel (%p215) target = $region73
        $region72: #{tpu_custom_call.1} parent=68 // pred_region
          _
        $region73: #{tpu_custom_call.1} parent=68 // pred_fallthru
          _
        %s218 = sand.u32 %s37, 1
        %s219 = sand.u32 %s37, 1
        %s220 = smul.addr %s219, 12
        %s221 = scalar_lea.vmem [#allocation3], %s220
        %p222 = pneg %p50
        %p223 = pneg %p47
        %p224 = pneg %p71
        %p225 = pneg %p68
        %p226 = pneg %p92
        %p227 = pneg %p89
        %p228 = pneg %p118
        %p229 = pneg %p115
        %s230 = smul.u32 3, %s19
        %p232 = scmp.eq.s32.totalorder %s20, 0
        // Predicated region
        $region74: #{tpu_custom_call.1} parent=68 // pred_check
          %p233 = pneg %p232
        $region75: #{tpu_custom_call.1} parent=68 // pred_check_branch
          %235 = sbr.rel (%p233) target = $region77
        $region76: #{tpu_custom_call.1} parent=68 // pred_region
          %vm236 = vcmask 64512
          %237 = vst.msk [vmem:[#allocation2] sm:$0xff] %vm236, 0.0
          %238 = vst.msk [vmem:[#allocation2 + $0x8] sm:$0xff] %vm236, 0.0
          %239 = vst.msk [vmem:[#allocation2 + $0x10] sm:$0xff] %vm236, 0.0
          %240 = vst.msk [vmem:[#allocation2 + $0x18] sm:$0xff] %vm236, 0.0
          %241 = vst.msk [vmem:[#allocation2 + $0x20] sm:$0xff] %vm236, 0.0
          %242 = vst.msk [vmem:[#allocation2 + $0x28] sm:$0xff] %vm236, 0.0
          %243 = vst.msk [vmem:[#allocation2 + $0x30] sm:$0xff] %vm236, 0.0
          %244 = vst.msk [vmem:[#allocation2 + $0x38] sm:$0xff] %vm236, 0.0
          %245 = vst.msk [vmem:[#allocation2 + $0x40] sm:$0xff] %vm236, 0.0
          %246 = vst.msk [vmem:[#allocation2 + $0x48] sm:$0xff] %vm236, 0.0
          %247 = vst.msk [vmem:[#allocation2 + $0x50] sm:$0xff] %vm236, 0.0
          %248 = vst.msk [vmem:[#allocation2 + $0x58] sm:$0xff] %vm236, 0.0
          %249 = vst.msk [vmem:[#allocation2 + $0x60] sm:$0xff] %vm236, 0.0
          %250 = vst.msk [vmem:[#allocation2 + $0x68] sm:$0xff] %vm236, 0.0
          %251 = vst.msk [vmem:[#allocation2 + $0x70] sm:$0xff] %vm236, 0.0
          %252 = vst.msk [vmem:[#allocation2 + $0x78] sm:$0xff] %vm236, 0.0
        $region77: #{tpu_custom_call.1} parent=68 // pred_fallthru
          _
        %v253 = vld [vmem:[%s1] sm:$0xf]
        %v254 = vld [vmem:[%s1 + $0x4] sm:$0xf]
        %v255 = vld [vmem:[%s1 + $0x8] sm:$0xf]
        %v256 = vld [vmem:[%s1 + $0xc] sm:$0xf]
        %v257 = vld [vmem:[%s1 + $0x10] sm:$0xf]
        %v258 = vld [vmem:[%s1 + $0x14] sm:$0xf]
        %v259 = vld [vmem:[%s1 + $0x18] sm:$0xf]
        %v260 = vld [vmem:[%s1 + $0x1c] sm:$0xf]
        %v261 = vld [vmem:[%s1 + $0x20] sm:$0xf]
        %v262 = vld [vmem:[%s1 + $0x24] sm:$0xf]
        %v263 = vld [vmem:[%s1 + $0x28] sm:$0xf]
        %v264 = vld [vmem:[%s1 + $0x2c] sm:$0xf]
        %v265 = vld [vmem:[%s1 + $0x30] sm:$0xf]
        %v266 = vld [vmem:[%s1 + $0x34] sm:$0xf]
        %v267 = vld [vmem:[%s1 + $0x38] sm:$0xf]
        %v268 = vld [vmem:[%s1 + $0x3c] sm:$0xf]
        %v269 = vld [vmem:[%s2] sm:$0xff]
        %v270 = vld [vmem:[%s2 + $0x8] sm:$0xff]
        %v271 = vld [vmem:[%s2 + $0x10] sm:$0xff]
        %v272 = vld [vmem:[%s2 + $0x18] sm:$0xff]
        %v273 = vld [vmem:[%s2 + $0x20] sm:$0xff]
        %v274 = vld [vmem:[%s2 + $0x28] sm:$0xff]
        %v275 = vld [vmem:[%s2 + $0x30] sm:$0xff]
        %v276 = vld [vmem:[%s2 + $0x38] sm:$0xff]
        %v277 = vld [vmem:[%s2 + $0x40] sm:$0xff]
        %v278 = vld [vmem:[%s2 + $0x48] sm:$0xff]
        %v279 = vld [vmem:[%s2 + $0x50] sm:$0xff]
        %v280 = vld [vmem:[%s2 + $0x58] sm:$0xff]
        %v281 = vld [vmem:[%s2 + $0x60] sm:$0xff]
        %v282 = vld [vmem:[%s2 + $0x68] sm:$0xff]
        %v283 = vld [vmem:[%s2 + $0x70] sm:$0xff]
        %v284 = vld [vmem:[%s2 + $0x78] sm:$0xff]
        %v285 = vld [vmem:[%s214] sm:$0x3]
        %287 = vset.pattern.permute.xlu0 0
        %288 = vperm.xlu0 %287, %v269
        %v289 = vpop.permute.xlu0 %288
        %292 = vset.pattern.permute.xlu0 0
        %293 = vperm.xlu0 %292, %v270
        %v294 = vpop.permute.xlu0 %293
        %297 = vset.pattern.permute.xlu0 0
        %298 = vperm.xlu0 %297, %v271
        %v299 = vpop.permute.xlu0 %298
        %302 = vset.pattern.permute.xlu0 0
        %303 = vperm.xlu0 %302, %v272
        %v304 = vpop.permute.xlu0 %303
        %307 = vset.pattern.permute.xlu0 0
        %308 = vperm.xlu0 %307, %v273
        %v309 = vpop.permute.xlu0 %308
        %312 = vset.pattern.permute.xlu0 0
        %313 = vperm.xlu0 %312, %v274
        %v314 = vpop.permute.xlu0 %313
        %317 = vset.pattern.permute.xlu0 0
        %318 = vperm.xlu0 %317, %v275
        %v319 = vpop.permute.xlu0 %318
        %322 = vset.pattern.permute.xlu0 0
        %323 = vperm.xlu0 %322, %v276
        %v324 = vpop.permute.xlu0 %323
        %327 = vset.pattern.permute.xlu0 0
        %328 = vperm.xlu0 %327, %v277
        %v329 = vpop.permute.xlu0 %328
        %332 = vset.pattern.permute.xlu0 0
        %333 = vperm.xlu0 %332, %v278
        %v334 = vpop.permute.xlu0 %333
        %337 = vset.pattern.permute.xlu0 0
        %338 = vperm.xlu0 %337, %v279
        %v339 = vpop.permute.xlu0 %338
        %342 = vset.pattern.permute.xlu0 0
        %343 = vperm.xlu0 %342, %v280
        %v344 = vpop.permute.xlu0 %343
        %347 = vset.pattern.permute.xlu0 0
        %348 = vperm.xlu0 %347, %v281
        %v349 = vpop.permute.xlu0 %348
        %352 = vset.pattern.permute.xlu0 0
        %353 = vperm.xlu0 %352, %v282
        %v354 = vpop.permute.xlu0 %353
        %357 = vset.pattern.permute.xlu0 0
        %358 = vperm.xlu0 %357, %v283
        %v359 = vpop.permute.xlu0 %358
        %362 = vset.pattern.permute.xlu0 0
        %363 = vperm.xlu0 %362, %v284
        %v364 = vpop.permute.xlu0 %363
        %v382 = vunpack.c.l.b16 %v253
        %v383 = vunpack.c.l.b16 %v254
        %v384 = vunpack.c.l.b16 %v255
        %v385 = vunpack.c.l.b16 %v256
        %v386 = vunpack.c.l.b16 %v257
        %v387 = vunpack.c.l.b16 %v258
        %v388 = vunpack.c.l.b16 %v259
        %v389 = vunpack.c.l.b16 %v260
        %v390 = vunpack.c.l.b16 %v261
        %v391 = vunpack.c.l.b16 %v262
        %v392 = vunpack.c.l.b16 %v263
        %v393 = vunpack.c.l.b16 %v264
        %v394 = vunpack.c.l.b16 %v265
        %v395 = vunpack.c.l.b16 %v266
        %v396 = vunpack.c.l.b16 %v267
        %v397 = vunpack.c.l.b16 %v268
        %v398 = vpack.c.b16 %v383, %v382
        %v399 = vpack.c.b16 %v385, %v384
        %v400 = vpack.c.b16 %v387, %v386
        %v401 = vpack.c.b16 %v389, %v388
        %v402 = vpack.c.b16 %v391, %v390
        %v403 = vpack.c.b16 %v393, %v392
        %v404 = vpack.c.b16 %v395, %v394
        %v405 = vpack.c.b16 %v397, %v396
        %vm406 = vcmask 23552
        %v408 = vsel %vm406, %v398, 0
        %v411 = vsel %vm406, %v399, 0
        %v414 = vsel %vm406, %v400, 0
        %v417 = vsel %vm406, %v401, 0
        %v420 = vsel %vm406, %v402, 0
        %v423 = vsel %vm406, %v403, 0
        %v426 = vsel %vm406, %v404, 0
        %v429 = vsel %vm406, %v405, 0
        %vm431 = vcmask 1040384
        %vm432 = vcmask 1041408
        %v433 = vsel %vm431, 4294967295, 65535
        %v434 = vsel %vm432, %v433, 0
        %v436 = vand.u32 %v285, %v434
        %438 = vmatpush.bf16.msra.mxu0 0
        %439 = vmatpush.bf16.msra.mxu0 0
        %440 = vmatpush.bf16.msra.mxu0 0
        %441 = vmatpush.bf16.msra.mxu0 0
        %442 = vmatpush.bf16.msra.mxu0 0
        %443 = vmatpush.bf16.msra.mxu0 0
        %444 = vmatpush.bf16.msra.mxu0 0
        %445 = vmatpush.bf16.msra.mxu0 %v436
        %446 = vmatmul.bf16.gmra.mxu0 %v408
        %v447 = vpop.f32.mrf.mxu0
        %v448 = vadd.f32 %v289, %v447
        %v449 = vpop.f32.mrf.mxu0
        %v450 = vadd.f32 %v294, %v449
        %451 = vmatmul.bf16.gmra.mxu0 %v411
        %v452 = vpop.f32.mrf.mxu0
        %v453 = vadd.f32 %v299, %v452
        %v454 = vpop.f32.mrf.mxu0
        %v455 = vadd.f32 %v304, %v454
        %456 = vmatmul.bf16.gmra.mxu0 %v414
        %v457 = vpop.f32.mrf.mxu0
        %v458 = vadd.f32 %v309, %v457
        %v459 = vpop.f32.mrf.mxu0
        %v460 = vadd.f32 %v314, %v459
        %461 = vmatmul.bf16.gmra.mxu0 %v417
        %v462 = vpop.f32.mrf.mxu0
        %v463 = vadd.f32 %v319, %v462
        %v464 = vpop.f32.mrf.mxu0
        %v465 = vadd.f32 %v324, %v464
        %466 = vmatmul.bf16.gmra.mxu0 %v420
        %v467 = vpop.f32.mrf.mxu0
        %v468 = vadd.f32 %v329, %v467
        %v469 = vpop.f32.mrf.mxu0
        %v470 = vadd.f32 %v334, %v469
        %471 = vmatmul.bf16.gmra.mxu0 %v423
        %v472 = vpop.f32.mrf.mxu0
        %v473 = vadd.f32 %v339, %v472
        %v474 = vpop.f32.mrf.mxu0
        %v475 = vadd.f32 %v344, %v474
        %476 = vmatmul.bf16.gmra.mxu0 %v426
        %v477 = vpop.f32.mrf.mxu0
        %v478 = vadd.f32 %v349, %v477
        %v479 = vpop.f32.mrf.mxu0
        %v480 = vadd.f32 %v354, %v479
        %481 = vmatmul.bf16.gmra.mxu0 %v429
        %v482 = vpop.f32.mrf.mxu0
        %v483 = vadd.f32 %v359, %v482
        %v484 = vpop.f32.mrf.mxu0
        %v485 = vadd.f32 %v364, %v484
        %486 = vdwg.mxu0
        %v487 = vmax.f32 %v448, 0.0
        %v488 = vmax.f32 %v450, 0.0
        %v489 = vmax.f32 %v453, 0.0
        %v490 = vmax.f32 %v455, 0.0
        %v491 = vmax.f32 %v458, 0.0
        %v492 = vmax.f32 %v460, 0.0
        %v493 = vmax.f32 %v463, 0.0
        %v494 = vmax.f32 %v465, 0.0
        %v495 = vmax.f32 %v468, 0.0
        %v496 = vmax.f32 %v470, 0.0
        %v497 = vmax.f32 %v473, 0.0
        %v498 = vmax.f32 %v475, 0.0
        %v499 = vmax.f32 %v478, 0.0
        %v500 = vmax.f32 %v480, 0.0
        %v501 = vmax.f32 %v483, 0.0
        %v502 = vmax.f32 %v485, 0.0
        %v503 = vld [vmem:[#allocation2] sm:$0xff]
        %v504 = vld [vmem:[#allocation2 + $0x8] sm:$0xff]
        %v505 = vld [vmem:[#allocation2 + $0x10] sm:$0xff]
        %v506 = vld [vmem:[#allocation2 + $0x18] sm:$0xff]
        %v507 = vld [vmem:[#allocation2 + $0x20] sm:$0xff]
        %v508 = vld [vmem:[#allocation2 + $0x28] sm:$0xff]
        %v509 = vld [vmem:[#allocation2 + $0x30] sm:$0xff]
        %v510 = vld [vmem:[#allocation2 + $0x38] sm:$0xff]
        %v511 = vld [vmem:[#allocation2 + $0x40] sm:$0xff]
        %v512 = vld [vmem:[#allocation2 + $0x48] sm:$0xff]
        %v513 = vld [vmem:[#allocation2 + $0x50] sm:$0xff]
        %v514 = vld [vmem:[#allocation2 + $0x58] sm:$0xff]
        %v515 = vld [vmem:[#allocation2 + $0x60] sm:$0xff]
        %v516 = vld [vmem:[#allocation2 + $0x68] sm:$0xff]
        %v517 = vld [vmem:[#allocation2 + $0x70] sm:$0xff]
        %v518 = vld [vmem:[#allocation2 + $0x78] sm:$0xff]
        %519 = vadd.xlane.f32.xlu0 %v487
        %v520 = vpop.xlane.xlu0 %519
        %521 = vadd.xlane.f32.xlu0 %v488
        %v522 = vpop.xlane.xlu0 %521
        %523 = vadd.xlane.f32.xlu0 %v489
        %v524 = vpop.xlane.xlu0 %523
        %525 = vadd.xlane.f32.xlu0 %v490
        %v526 = vpop.xlane.xlu0 %525
        %527 = vadd.xlane.f32.xlu0 %v491
        %v528 = vpop.xlane.xlu0 %527
        %529 = vadd.xlane.f32.xlu0 %v492
        %v530 = vpop.xlane.xlu0 %529
        %531 = vadd.xlane.f32.xlu0 %v493
        %v532 = vpop.xlane.xlu0 %531
        %533 = vadd.xlane.f32.xlu0 %v494
        %v534 = vpop.xlane.xlu0 %533
        %535 = vadd.xlane.f32.xlu0 %v495
        %v536 = vpop.xlane.xlu0 %535
        %537 = vadd.xlane.f32.xlu0 %v496
        %v538 = vpop.xlane.xlu0 %537
        %539 = vadd.xlane.f32.xlu0 %v497
        %v540 = vpop.xlane.xlu0 %539
        %541 = vadd.xlane.f32.xlu0 %v498
        %v542 = vpop.xlane.xlu0 %541
        %543 = vadd.xlane.f32.xlu0 %v499
        %v544 = vpop.xlane.xlu0 %543
        %545 = vadd.xlane.f32.xlu0 %v500
        %v546 = vpop.xlane.xlu0 %545
        %547 = vadd.xlane.f32.xlu0 %v501
        %v548 = vpop.xlane.xlu0 %547
        %549 = vadd.xlane.f32.xlu0 %v502
        %v550 = vpop.xlane.xlu0 %549
        %v551 = vadd.f32 %v503, %v520
        %v552 = vadd.f32 %v504, %v522
        %v553 = vadd.f32 %v505, %v524
        %v554 = vadd.f32 %v506, %v526
        %v555 = vadd.f32 %v507, %v528
        %v556 = vadd.f32 %v508, %v530
        %v557 = vadd.f32 %v509, %v532
        %v558 = vadd.f32 %v510, %v534
        %v559 = vadd.f32 %v511, %v536
        %v560 = vadd.f32 %v512, %v538
        %v561 = vadd.f32 %v513, %v540
        %v562 = vadd.f32 %v514, %v542
        %v563 = vadd.f32 %v515, %v544
        %v564 = vadd.f32 %v516, %v546
        %v565 = vadd.f32 %v517, %v548
        %v566 = vadd.f32 %v518, %v550
        %vm567 = vcmask 7168
        %568 = vst.msk [vmem:[#allocation2] sm:$0xff] %vm567, %v551
        %569 = vst.msk [vmem:[#allocation2 + $0x8] sm:$0xff] %vm567, %v552
        %570 = vst.msk [vmem:[#allocation2 + $0x10] sm:$0xff] %vm567, %v553
        %571 = vst.msk [vmem:[#allocation2 + $0x18] sm:$0xff] %vm567, %v554
        %572 = vst.msk [vmem:[#allocation2 + $0x20] sm:$0xff] %vm567, %v555
        %573 = vst.msk [vmem:[#allocation2 + $0x28] sm:$0xff] %vm567, %v556
        %574 = vst.msk [vmem:[#allocation2 + $0x30] sm:$0xff] %vm567, %v557
        %575 = vst.msk [vmem:[#allocation2 + $0x38] sm:$0xff] %vm567, %v558
        %576 = vst.msk [vmem:[#allocation2 + $0x40] sm:$0xff] %vm567, %v559
        %577 = vst.msk [vmem:[#allocation2 + $0x48] sm:$0xff] %vm567, %v560
        %578 = vst.msk [vmem:[#allocation2 + $0x50] sm:$0xff] %vm567, %v561
        %579 = vst.msk [vmem:[#allocation2 + $0x58] sm:$0xff] %vm567, %v562
        %580 = vst.msk [vmem:[#allocation2 + $0x60] sm:$0xff] %vm567, %v563
        %581 = vst.msk [vmem:[#allocation2 + $0x68] sm:$0xff] %vm567, %v564
        %582 = vst.msk [vmem:[#allocation2 + $0x70] sm:$0xff] %vm567, %v565
        %583 = vst.msk [vmem:[#allocation2 + $0x78] sm:$0xff] %vm567, %v566
        %v584 = vld [vmem:[%s214] sm:$0x6]
        %v586 = vunpack.c.l.b16 %v584
        %v587 = vpack.c.b16 %v586, %v586
        %v589 = vshrl.u32 %v587, 16
        %v591 = vrot.slane %v589, 1
        %v592 = vshll.u32 %v587, 16
        %v594 = vrot.slane %v592, 2
        %v595 = vor.u32 %v591, %v594
        %v597 = vand.u32 %v595, %v434
        %599 = vmatpush.bf16.msra.mxu0 0
        %600 = vmatpush.bf16.msra.mxu0 0
        %601 = vmatpush.bf16.msra.mxu0 0
        %602 = vmatpush.bf16.msra.mxu0 0
        %603 = vmatpush.bf16.msra.mxu0 0
        %604 = vmatpush.bf16.msra.mxu0 0
        %605 = vmatpush.bf16.msra.mxu0 0
        %606 = vmatpush.bf16.msra.mxu0 %v597
        %607 = vmatmul.bf16.gmra.mxu0 %v408
        %v608 = vpop.f32.mrf.mxu0
        %v609 = vadd.f32 %v289, %v608
        %v610 = vpop.f32.mrf.mxu0
        %v611 = vadd.f32 %v294, %v610
        %612 = vmatmul.bf16.gmra.mxu0 %v411
        %v613 = vpop.f32.mrf.mxu0
        %v614 = vadd.f32 %v299, %v613
        %v615 = vpop.f32.mrf.mxu0
        %v616 = vadd.f32 %v304, %v615
        %617 = vmatmul.bf16.gmra.mxu0 %v414
        %v618 = vpop.f32.mrf.mxu0
        %v619 = vadd.f32 %v309, %v618
        %v620 = vpop.f32.mrf.mxu0
        %v621 = vadd.f32 %v314, %v620
        %622 = vmatmul.bf16.gmra.mxu0 %v417
        %v623 = vpop.f32.mrf.mxu0
        %v624 = vadd.f32 %v319, %v623
        %v625 = vpop.f32.mrf.mxu0
        %v626 = vadd.f32 %v324, %v625
        %627 = vmatmul.bf16.gmra.mxu0 %v420
        %v628 = vpop.f32.mrf.mxu0
        %v629 = vadd.f32 %v329, %v628
        %v630 = vpop.f32.mrf.mxu0
        %v631 = vadd.f32 %v334, %v630
        %632 = vmatmul.bf16.gmra.mxu0 %v423
        %v633 = vpop.f32.mrf.mxu0
        %v634 = vadd.f32 %v339, %v633
        %v635 = vpop.f32.mrf.mxu0
        %v636 = vadd.f32 %v344, %v635
        %637 = vmatmul.bf16.gmra.mxu0 %v426
        %v638 = vpop.f32.mrf.mxu0
        %v639 = vadd.f32 %v349, %v638
        %v640 = vpop.f32.mrf.mxu0
        %v641 = vadd.f32 %v354, %v640
        %642 = vmatmul.bf16.gmra.mxu0 %v429
        %v643 = vpop.f32.mrf.mxu0
        %v644 = vadd.f32 %v359, %v643
        %v645 = vpop.f32.mrf.mxu0
        %v646 = vadd.f32 %v364, %v645
        %647 = vdwg.mxu0
        %v648 = vmax.f32 %v609, 0.0
        %v649 = vmax.f32 %v611, 0.0
        %v650 = vmax.f32 %v614, 0.0
        %v651 = vmax.f32 %v616, 0.0
        %v652 = vmax.f32 %v619, 0.0
        %v653 = vmax.f32 %v621, 0.0
        %v654 = vmax.f32 %v624, 0.0
        %v655 = vmax.f32 %v626, 0.0
        %v656 = vmax.f32 %v629, 0.0
        %v657 = vmax.f32 %v631, 0.0
        %v658 = vmax.f32 %v634, 0.0
        %v659 = vmax.f32 %v636, 0.0
        %v660 = vmax.f32 %v639, 0.0
        %v661 = vmax.f32 %v641, 0.0
        %v662 = vmax.f32 %v644, 0.0
        %v663 = vmax.f32 %v646, 0.0
        %v664 = vld [vmem:[#allocation2] sm:$0xff]
        %v665 = vld [vmem:[#allocation2 + $0x8] sm:$0xff]
        %v666 = vld [vmem:[#allocation2 + $0x10] sm:$0xff]
        %v667 = vld [vmem:[#allocation2 + $0x18] sm:$0xff]
        %v668 = vld [vmem:[#allocation2 + $0x20] sm:$0xff]
        %v669 = vld [vmem:[#allocation2 + $0x28] sm:$0xff]
        %v670 = vld [vmem:[#allocation2 + $0x30] sm:$0xff]
        %v671 = vld [vmem:[#allocation2 + $0x38] sm:$0xff]
        %v672 = vld [vmem:[#allocation2 + $0x40] sm:$0xff]
        %v673 = vld [vmem:[#allocation2 + $0x48] sm:$0xff]
        %v674 = vld [vmem:[#allocation2 + $0x50] sm:$0xff]
        %v675 = vld [vmem:[#allocation2 + $0x58] sm:$0xff]
        %v676 = vld [vmem:[#allocation2 + $0x60] sm:$0xff]
        %v677 = vld [vmem:[#allocation2 + $0x68] sm:$0xff]
        %v678 = vld [vmem:[#allocation2 + $0x70] sm:$0xff]
        %v679 = vld [vmem:[#allocation2 + $0x78] sm:$0xff]
        %680 = vadd.xlane.f32.xlu0 %v648
        %v681 = vpop.xlane.xlu0 %680
        %682 = vadd.xlane.f32.xlu0 %v649
        %v683 = vpop.xlane.xlu0 %682
        %684 = vadd.xlane.f32.xlu0 %v650
        %v685 = vpop.xlane.xlu0 %684
        %686 = vadd.xlane.f32.xlu0 %v651
        %v687 = vpop.xlane.xlu0 %686
        %688 = vadd.xlane.f32.xlu0 %v652
        %v689 = vpop.xlane.xlu0 %688
        %690 = vadd.xlane.f32.xlu0 %v653
        %v691 = vpop.xlane.xlu0 %690
        %692 = vadd.xlane.f32.xlu0 %v654
        %v693 = vpop.xlane.xlu0 %692
        %694 = vadd.xlane.f32.xlu0 %v655
        %v695 = vpop.xlane.xlu0 %694
        %696 = vadd.xlane.f32.xlu0 %v656
        %v697 = vpop.xlane.xlu0 %696
        %698 = vadd.xlane.f32.xlu0 %v657
        %v699 = vpop.xlane.xlu0 %698
        %700 = vadd.xlane.f32.xlu0 %v658
        %v701 = vpop.xlane.xlu0 %700
        %702 = vadd.xlane.f32.xlu0 %v659
        %v703 = vpop.xlane.xlu0 %702
        %704 = vadd.xlane.f32.xlu0 %v660
        %v705 = vpop.xlane.xlu0 %704
        %706 = vadd.xlane.f32.xlu0 %v661
        %v707 = vpop.xlane.xlu0 %706
        %708 = vadd.xlane.f32.xlu0 %v662
        %v709 = vpop.xlane.xlu0 %708
        %710 = vadd.xlane.f32.xlu0 %v663
        %v711 = vpop.xlane.xlu0 %710
        %v712 = vadd.f32 %v664, %v681
        %v713 = vadd.f32 %v665, %v683
        %v714 = vadd.f32 %v666, %v685
        %v715 = vadd.f32 %v667, %v687
        %v716 = vadd.f32 %v668, %v689
        %v717 = vadd.f32 %v669, %v691
        %v718 = vadd.f32 %v670, %v693
        %v719 = vadd.f32 %v671, %v695
        %v720 = vadd.f32 %v672, %v697
        %v721 = vadd.f32 %v673, %v699
        %v722 = vadd.f32 %v674, %v701
        %v723 = vadd.f32 %v675, %v703
        %v724 = vadd.f32 %v676, %v705
        %v725 = vadd.f32 %v677, %v707
        %v726 = vadd.f32 %v678, %v709
        %v727 = vadd.f32 %v679, %v711
        %vm728 = vcmask 15368
        %729 = vst.msk [vmem:[#allocation2] sm:$0xff] %vm728, %v712
        %730 = vst.msk [vmem:[#allocation2 + $0x8] sm:$0xff] %vm728, %v713
        %731 = vst.msk [vmem:[#allocation2 + $0x10] sm:$0xff] %vm728, %v714
        %732 = vst.msk [vmem:[#allocation2 + $0x18] sm:$0xff] %vm728, %v715
        %733 = vst.msk [vmem:[#allocation2 + $0x20] sm:$0xff] %vm728, %v716
        %734 = vst.msk [vmem:[#allocation2 + $0x28] sm:$0xff] %vm728, %v717
        %735 = vst.msk [vmem:[#allocation2 + $0x30] sm:$0xff] %vm728, %v718
        %736 = vst.msk [vmem:[#allocation2 + $0x38] sm:$0xff] %vm728, %v719
        %737 = vst.msk [vmem:[#allocation2 + $0x40] sm:$0xff] %vm728, %v720
        %738 = vst.msk [vmem:[#allocation2 + $0x48] sm:$0xff] %vm728, %v721
        %739 = vst.msk [vmem:[#allocation2 + $0x50] sm:$0xff] %vm728, %v722
        %740 = vst.msk [vmem:[#allocation2 + $0x58] sm:$0xff] %vm728, %v723
        %741 = vst.msk [vmem:[#allocation2 + $0x60] sm:$0xff] %vm728, %v724
        %742 = vst.msk [vmem:[#allocation2 + $0x68] sm:$0xff] %vm728, %v725
        %743 = vst.msk [vmem:[#allocation2 + $0x70] sm:$0xff] %vm728, %v726
        %744 = vst.msk [vmem:[#allocation2 + $0x78] sm:$0xff] %vm728, %v727
        %v745 = vld [vmem:[%s214] sm:$0x8]
        %v746 = vld [vmem:[%s214 + $0x4] sm:$0x1]
        %v749 = vunpack.c.l.b16 %v745
        %v750 = vunpack.c.l.b16 %v746
        %v751 = vpack.c.b16 %v750, %v749
        %v752 = vrot.slane %v751, 3
        %v754 = vand.u32 %v752, %v434
        %756 = vmatpush.bf16.msra.mxu0 0
        %757 = vmatpush.bf16.msra.mxu0 0
        %758 = vmatpush.bf16.msra.mxu0 0
        %759 = vmatpush.bf16.msra.mxu0 0
        %760 = vmatpush.bf16.msra.mxu0 0
        %761 = vmatpush.bf16.msra.mxu0 0
        %762 = vmatpush.bf16.msra.mxu0 0
        %763 = vmatpush.bf16.msra.mxu0 %v754
        %764 = vmatmul.bf16.gmra.mxu0 %v408
        %v765 = vpop.f32.mrf.mxu0
        %v766 = vadd.f32 %v289, %v765
        %v767 = vpop.f32.mrf.mxu0
        %v768 = vadd.f32 %v294, %v767
        %769 = vmatmul.bf16.gmra.mxu0 %v411
        %v770 = vpop.f32.mrf.mxu0
        %v771 = vadd.f32 %v299, %v770
        %v772 = vpop.f32.mrf.mxu0
        %v773 = vadd.f32 %v304, %v772
        %774 = vmatmul.bf16.gmra.mxu0 %v414
        %v775 = vpop.f32.mrf.mxu0
        %v776 = vadd.f32 %v309, %v775
        %v777 = vpop.f32.mrf.mxu0
        %v778 = vadd.f32 %v314, %v777
        %779 = vmatmul.bf16.gmra.mxu0 %v417
        %v780 = vpop.f32.mrf.mxu0
        %v781 = vadd.f32 %v319, %v780
        %v782 = vpop.f32.mrf.mxu0
        %v783 = vadd.f32 %v324, %v782
        %784 = vmatmul.bf16.gmra.mxu0 %v420
        %v785 = vpop.f32.mrf.mxu0
        %v786 = vadd.f32 %v329, %v785
        %v787 = vpop.f32.mrf.mxu0
        %v788 = vadd.f32 %v334, %v787
        %789 = vmatmul.bf16.gmra.mxu0 %v423
        %v790 = vpop.f32.mrf.mxu0
        %v791 = vadd.f32 %v339, %v790
        %v792 = vpop.f32.mrf.mxu0
        %v793 = vadd.f32 %v344, %v792
        %794 = vmatmul.bf16.gmra.mxu0 %v426
        %v795 = vpop.f32.mrf.mxu0
        %v796 = vadd.f32 %v349, %v795
        %v797 = vpop.f32.mrf.mxu0
        %v798 = vadd.f32 %v354, %v797
        %799 = vmatmul.bf16.gmra.mxu0 %v429
        %v800 = vpop.f32.mrf.mxu0
        %v801 = vadd.f32 %v359, %v800
        %v802 = vpop.f32.mrf.mxu0
        %v803 = vadd.f32 %v364, %v802
        %804 = vdwg.mxu0
        %v805 = vmax.f32 %v766, 0.0
        %v806 = vmax.f32 %v768, 0.0
        %v807 = vmax.f32 %v771, 0.0
        %v808 = vmax.f32 %v773, 0.0
        %v809 = vmax.f32 %v776, 0.0
        %v810 = vmax.f32 %v778, 0.0
        %v811 = vmax.f32 %v781, 0.0
        %v812 = vmax.f32 %v783, 0.0
        %v813 = vmax.f32 %v786, 0.0
        %v814 = vmax.f32 %v788, 0.0
        %v815 = vmax.f32 %v791, 0.0
        %v816 = vmax.f32 %v793, 0.0
        %v817 = vmax.f32 %v796, 0.0
        %v818 = vmax.f32 %v798, 0.0
        %v819 = vmax.f32 %v801, 0.0
        %v820 = vmax.f32 %v803, 0.0
        %v821 = vld [vmem:[#allocation2] sm:$0xff]
        %v822 = vld [vmem:[#allocation2 + $0x8] sm:$0xff]
        %v823 = vld [vmem:[#allocation2 + $0x10] sm:$0xff]
        %v824 = vld [vmem:[#allocation2 + $0x18] sm:$0xff]
        %v825 = vld [vmem:[#allocation2 + $0x20] sm:$0xff]
        %v826 = vld [vmem:[#allocation2 + $0x28] sm:$0xff]
        %v827 = vld [vmem:[#allocation2 + $0x30] sm:$0xff]
        %v828 = vld [vmem:[#allocation2 + $0x38] sm:$0xff]
        %v829 = vld [vmem:[#allocation2 + $0x40] sm:$0xff]
        %v830 = vld [vmem:[#allocation2 + $0x48] sm:$0xff]
        %v831 = vld [vmem:[#allocation2 + $0x50] sm:$0xff]
        %v832 = vld [vmem:[#allocation2 + $0x58] sm:$0xff]
        %v833 = vld [vmem:[#allocation2 + $0x60] sm:$0xff]
        %v834 = vld [vmem:[#allocation2 + $0x68] sm:$0xff]
        %v835 = vld [vmem:[#allocation2 + $0x70] sm:$0xff]
        %v836 = vld [vmem:[#allocation2 + $0x78] sm:$0xff]
        %837 = vadd.xlane.f32.xlu0 %v805
        %v838 = vpop.xlane.xlu0 %837
        %839 = vadd.xlane.f32.xlu0 %v806
        %v840 = vpop.xlane.xlu0 %839
        %841 = vadd.xlane.f32.xlu0 %v807
        %v842 = vpop.xlane.xlu0 %841
        %843 = vadd.xlane.f32.xlu0 %v808
        %v844 = vpop.xlane.xlu0 %843
        %845 = vadd.xlane.f32.xlu0 %v809
        %v846 = vpop.xlane.xlu0 %845
        %847 = vadd.xlane.f32.xlu0 %v810
        %v848 = vpop.xlane.xlu0 %847
        %849 = vadd.xlane.f32.xlu0 %v811
        %v850 = vpop.xlane.xlu0 %849
        %851 = vadd.xlane.f32.xlu0 %v812
        %v852 = vpop.xlane.xlu0 %851
        %853 = vadd.xlane.f32.xlu0 %v813
        %v854 = vpop.xlane.xlu0 %853
        %855 = vadd.xlane.f32.xlu0 %v814
        %v856 = vpop.xlane.xlu0 %855
        %857 = vadd.xlane.f32.xlu0 %v815
        %v858 = vpop.xlane.xlu0 %857
        %859 = vadd.xlane.f32.xlu0 %v816
        %v860 = vpop.xlane.xlu0 %859
        %861 = vadd.xlane.f32.xlu0 %v817
        %v862 = vpop.xlane.xlu0 %861
        %863 = vadd.xlane.f32.xlu0 %v818
        %v864 = vpop.xlane.xlu0 %863
        %865 = vadd.xlane.f32.xlu0 %v819
        %v866 = vpop.xlane.xlu0 %865
        %867 = vadd.xlane.f32.xlu0 %v820
        %v868 = vpop.xlane.xlu0 %867
        %v869 = vadd.f32 %v821, %v838
        %v870 = vadd.f32 %v822, %v840
        %v871 = vadd.f32 %v823, %v842
        %v872 = vadd.f32 %v824, %v844
        %v873 = vadd.f32 %v825, %v846
        %v874 = vadd.f32 %v826, %v848
        %v875 = vadd.f32 %v827, %v850
        %v876 = vadd.f32 %v828, %v852
        %v877 = vadd.f32 %v829, %v854
        %v878 = vadd.f32 %v830, %v856
        %v879 = vadd.f32 %v831, %v858
        %v880 = vadd.f32 %v832, %v860
        %v881 = vadd.f32 %v833, %v862
        %v882 = vadd.f32 %v834, %v864
        %v883 = vadd.f32 %v835, %v866
        %v884 = vadd.f32 %v836, %v868
        %vm885 = vcmask 23568
        %886 = vst.msk [vmem:[#allocation2] sm:$0xff] %vm885, %v869
        %887 = vst.msk [vmem:[#allocation2 + $0x8] sm:$0xff] %vm885, %v870
        %888 = vst.msk [vmem:[#allocation2 + $0x10] sm:$0xff] %vm885, %v871
        %889 = vst.msk [vmem:[#allocation2 + $0x18] sm:$0xff] %vm885, %v872
        %890 = vst.msk [vmem:[#allocation2 + $0x20] sm:$0xff] %vm885, %v873
        %891 = vst.msk [vmem:[#allocation2 + $0x28] sm:$0xff] %vm885, %v874
        %892 = vst.msk [vmem:[#allocation2 + $0x30] sm:$0xff] %vm885, %v875
        %893 = vst.msk [vmem:[#allocation2 + $0x38] sm:$0xff] %vm885, %v876
        %894 = vst.msk [vmem:[#allocation2 + $0x40] sm:$0xff] %vm885, %v877
        %895 = vst.msk [vmem:[#allocation2 + $0x48] sm:$0xff] %vm885, %v878
        %896 = vst.msk [vmem:[#allocation2 + $0x50] sm:$0xff] %vm885, %v879
        %897 = vst.msk [vmem:[#allocation2 + $0x58] sm:$0xff] %vm885, %v880
        %898 = vst.msk [vmem:[#allocation2 + $0x60] sm:$0xff] %vm885, %v881
        %899 = vst.msk [vmem:[#allocation2 + $0x68] sm:$0xff] %vm885, %v882
        %900 = vst.msk [vmem:[#allocation2 + $0x70] sm:$0xff] %vm885, %v883
        %901 = vst.msk [vmem:[#allocation2 + $0x78] sm:$0xff] %vm885, %v884
        %v902 = vld [vmem:[%s214 + $0x4] sm:$0x3]
        %v904 = vunpack.c.l.b16 %v902
        %v905 = vpack.c.b16 %v904, %v904
        %v907 = vshrl.u32 %v905, 16
        %v909 = vshll.u32 %v905, 16
        %v911 = vrot.slane %v909, 1
        %v912 = vor.u32 %v907, %v911
        %v914 = vand.u32 %v912, %v434
        %916 = vmatpush.bf16.msra.mxu0 0
        %917 = vmatpush.bf16.msra.mxu0 0
        %918 = vmatpush.bf16.msra.mxu0 0
        %919 = vmatpush.bf16.msra.mxu0 0
        %920 = vmatpush.bf16.msra.mxu0 0
        %921 = vmatpush.bf16.msra.mxu0 0
        %922 = vmatpush.bf16.msra.mxu0 0
        %923 = vmatpush.bf16.msra.mxu0 %v914
        %924 = vmatmul.bf16.gmra.mxu0 %v408
        %v925 = vpop.f32.mrf.mxu0
        %v926 = vadd.f32 %v289, %v925
        %v927 = vpop.f32.mrf.mxu0
        %v928 = vadd.f32 %v294, %v927
        %929 = vmatmul.bf16.gmra.mxu0 %v411
        %v930 = vpop.f32.mrf.mxu0
        %v931 = vadd.f32 %v299, %v930
        %v932 = vpop.f32.mrf.mxu0
        %v933 = vadd.f32 %v304, %v932
        %934 = vmatmul.bf16.gmra.mxu0 %v414
        %v935 = vpop.f32.mrf.mxu0
        %v936 = vadd.f32 %v309, %v935
        %v937 = vpop.f32.mrf.mxu0
        %v938 = vadd.f32 %v314, %v937
        %939 = vmatmul.bf16.gmra.mxu0 %v417
        %v940 = vpop.f32.mrf.mxu0
        %v941 = vadd.f32 %v319, %v940
        %v942 = vpop.f32.mrf.mxu0
        %v943 = vadd.f32 %v324, %v942
        %944 = vmatmul.bf16.gmra.mxu0 %v420
        %v945 = vpop.f32.mrf.mxu0
        %v946 = vadd.f32 %v329, %v945
        %v947 = vpop.f32.mrf.mxu0
        %v948 = vadd.f32 %v334, %v947
        %949 = vmatmul.bf16.gmra.mxu0 %v423
        %v950 = vpop.f32.mrf.mxu0
        %v951 = vadd.f32 %v339, %v950
        %v952 = vpop.f32.mrf.mxu0
        %v953 = vadd.f32 %v344, %v952
        %954 = vmatmul.bf16.gmra.mxu0 %v426
        %v955 = vpop.f32.mrf.mxu0
        %v956 = vadd.f32 %v349, %v955
        %v957 = vpop.f32.mrf.mxu0
        %v958 = vadd.f32 %v354, %v957
        %959 = vmatmul.bf16.gmra.mxu0 %v429
        %v960 = vpop.f32.mrf.mxu0
        %v961 = vadd.f32 %v359, %v960
        %v962 = vpop.f32.mrf.mxu0
        %v963 = vadd.f32 %v364, %v962
        %964 = vdwg.mxu0
        %v965 = vmax.f32 %v926, 0.0
        %v966 = vmax.f32 %v928, 0.0
        %v967 = vmax.f32 %v931, 0.0
        %v968 = vmax.f32 %v933, 0.0
        %v969 = vmax.f32 %v936, 0.0
        %v970 = vmax.f32 %v938, 0.0
        %v971 = vmax.f32 %v941, 0.0
        %v972 = vmax.f32 %v943, 0.0
        %v973 = vmax.f32 %v946, 0.0
        %v974 = vmax.f32 %v948, 0.0
        %v975 = vmax.f32 %v951, 0.0
        %v976 = vmax.f32 %v953, 0.0
        %v977 = vmax.f32 %v956, 0.0
        %v978 = vmax.f32 %v958, 0.0
        %v979 = vmax.f32 %v961, 0.0
        %v980 = vmax.f32 %v963, 0.0
        %v981 = vld [vmem:[#allocation2] sm:$0xff]
        %v982 = vld [vmem:[#allocation2 + $0x8] sm:$0xff]
        %v983 = vld [vmem:[#allocation2 + $0x10] sm:$0xff]
        %v984 = vld [vmem:[#allocation2 + $0x18] sm:$0xff]
        %v985 = vld [vmem:[#allocation2 + $0x20] sm:$0xff]
        %v986 = vld [vmem:[#allocation2 + $0x28] sm:$0xff]
        %v987 = vld [vmem:[#allocation2 + $0x30] sm:$0xff]
        %v988 = vld [vmem:[#allocation2 + $0x38] sm:$0xff]
        %v989 = vld [vmem:[#allocation2 + $0x40] sm:$0xff]
        %v990 = vld [vmem:[#allocation2 + $0x48] sm:$0xff]
        %v991 = vld [vmem:[#allocation2 + $0x50] sm:$0xff]
        %v992 = vld [vmem:[#allocation2 + $0x58] sm:$0xff]
        %v993 = vld [vmem:[#allocation2 + $0x60] sm:$0xff]
        %v994 = vld [vmem:[#allocation2 + $0x68] sm:$0xff]
        %v995 = vld [vmem:[#allocation2 + $0x70] sm:$0xff]
        %v996 = vld [vmem:[#allocation2 + $0x78] sm:$0xff]
        %997 = vadd.xlane.f32.xlu0 %v965
        %v998 = vpop.xlane.xlu0 %997
        %999 = vadd.xlane.f32.xlu0 %v966
        %v1000 = vpop.xlane.xlu0 %999
        %1001 = vadd.xlane.f32.xlu0 %v967
        %v1002 = vpop.xlane.xlu0 %1001
        %1003 = vadd.xlane.f32.xlu0 %v968
        %v1004 = vpop.xlane.xlu0 %1003
        %1005 = vadd.xlane.f32.xlu0 %v969
        %v1006 = vpop.xlane.xlu0 %1005
        %1007 = vadd.xlane.f32.xlu0 %v970
        %v1008 = vpop.xlane.xlu0 %1007
        %1009 = vadd.xlane.f32.xlu0 %v971
        %v1010 = vpop.xlane.xlu0 %1009
        %1011 = vadd.xlane.f32.xlu0 %v972
        %v1012 = vpop.xlane.xlu0 %1011
        %1013 = vadd.xlane.f32.xlu0 %v973
        %v1014 = vpop.xlane.xlu0 %1013
        %1015 = vadd.xlane.f32.xlu0 %v974
        %v1016 = vpop.xlane.xlu0 %1015
        %1017 = vadd.xlane.f32.xlu0 %v975
        %v1018 = vpop.xlane.xlu0 %1017
        %1019 = vadd.xlane.f32.xlu0 %v976
        %v1020 = vpop.xlane.xlu0 %1019
        %1021 = vadd.xlane.f32.xlu0 %v977
        %v1022 = vpop.xlane.xlu0 %1021
        %1023 = vadd.xlane.f32.xlu0 %v978
        %v1024 = vpop.xlane.xlu0 %1023
        %1025 = vadd.xlane.f32.xlu0 %v979
        %v1026 = vpop.xlane.xlu0 %1025
        %1027 = vadd.xlane.f32.xlu0 %v980
        %v1028 = vpop.xlane.xlu0 %1027
        %v1029 = vadd.f32 %v981, %v998
        %v1030 = vadd.f32 %v982, %v1000
        %v1031 = vadd.f32 %v983, %v1002
        %v1032 = vadd.f32 %v984, %v1004
        %v1033 = vadd.f32 %v985, %v1006
        %v1034 = vadd.f32 %v986, %v1008
        %v1035 = vadd.f32 %v987, %v1010
        %v1036 = vadd.f32 %v988, %v1012
        %v1037 = vadd.f32 %v989, %v1014
        %v1038 = vadd.f32 %v990, %v1016
        %v1039 = vadd.f32 %v991, %v1018
        %v1040 = vadd.f32 %v992, %v1020
        %v1041 = vadd.f32 %v993, %v1022
        %v1042 = vadd.f32 %v994, %v1024
        %v1043 = vadd.f32 %v995, %v1026
        %v1044 = vadd.f32 %v996, %v1028
        %vm1045 = vcmask 31768
        %1046 = vst.msk [vmem:[#allocation2] sm:$0xff] %vm1045, %v1029
        %1047 = vst.msk [vmem:[#allocation2 + $0x8] sm:$0xff] %vm1045, %v1030
        %1048 = vst.msk [vmem:[#allocation2 + $0x10] sm:$0xff] %vm1045, %v1031
        %1049 = vst.msk [vmem:[#allocation2 + $0x18] sm:$0xff] %vm1045, %v1032
        %1050 = vst.msk [vmem:[#allocation2 + $0x20] sm:$0xff] %vm1045, %v1033
        %1051 = vst.msk [vmem:[#allocation2 + $0x28] sm:$0xff] %vm1045, %v1034
        %1052 = vst.msk [vmem:[#allocation2 + $0x30] sm:$0xff] %vm1045, %v1035
        %1053 = vst.msk [vmem:[#allocation2 + $0x38] sm:$0xff] %vm1045, %v1036
        %1054 = vst.msk [vmem:[#allocation2 + $0x40] sm:$0xff] %vm1045, %v1037
        %1055 = vst.msk [vmem:[#allocation2 + $0x48] sm:$0xff] %vm1045, %v1038
        %1056 = vst.msk [vmem:[#allocation2 + $0x50] sm:$0xff] %vm1045, %v1039
        %1057 = vst.msk [vmem:[#allocation2 + $0x58] sm:$0xff] %vm1045, %v1040
        %1058 = vst.msk [vmem:[#allocation2 + $0x60] sm:$0xff] %vm1045, %v1041
        %1059 = vst.msk [vmem:[#allocation2 + $0x68] sm:$0xff] %vm1045, %v1042
        %1060 = vst.msk [vmem:[#allocation2 + $0x70] sm:$0xff] %vm1045, %v1043
        %1061 = vst.msk [vmem:[#allocation2 + $0x78] sm:$0xff] %vm1045, %v1044
        %v1062 = vld [vmem:[%s214 + $0x4] sm:$0xc]
        %v1064 = vunpack.c.l.b16 %v1062
        %v1065 = vpack.c.b16 %v1064, %v1064
        %v1066 = vrot.slane %v1065, 2
        %v1068 = vand.u32 %v1066, %v434
        %1070 = vmatpush.bf16.msra.mxu0 0
        %1071 = vmatpush.bf16.msra.mxu0 0
        %1072 = vmatpush.bf16.msra.mxu0 0
        %1073 = vmatpush.bf16.msra.mxu0 0
        %1074 = vmatpush.bf16.msra.mxu0 0
        %1075 = vmatpush.bf16.msra.mxu0 0
        %1076 = vmatpush.bf16.msra.mxu0 0
        %1077 = vmatpush.bf16.msra.mxu0 %v1068
        %1078 = vmatmul.bf16.gmra.mxu0 %v408
        %v1079 = vpop.f32.mrf.mxu0
        %v1080 = vadd.f32 %v289, %v1079
        %v1081 = vpop.f32.mrf.mxu0
        %v1082 = vadd.f32 %v294, %v1081
        %1083 = vmatmul.bf16.gmra.mxu0 %v411
        %v1084 = vpop.f32.mrf.mxu0
        %v1085 = vadd.f32 %v299, %v1084
        %v1086 = vpop.f32.mrf.mxu0
        %v1087 = vadd.f32 %v304, %v1086
        %1088 = vmatmul.bf16.gmra.mxu0 %v414
        %v1089 = vpop.f32.mrf.mxu0
        %v1090 = vadd.f32 %v309, %v1089
        %v1091 = vpop.f32.mrf.mxu0
        %v1092 = vadd.f32 %v314, %v1091
        %1093 = vmatmul.bf16.gmra.mxu0 %v417
        %v1094 = vpop.f32.mrf.mxu0
        %v1095 = vadd.f32 %v319, %v1094
        %v1096 = vpop.f32.mrf.mxu0
        %v1097 = vadd.f32 %v324, %v1096
        %1098 = vmatmul.bf16.gmra.mxu0 %v420
        %v1099 = vpop.f32.mrf.mxu0
        %v1100 = vadd.f32 %v329, %v1099
        %v1101 = vpop.f32.mrf.mxu0
        %v1102 = vadd.f32 %v334, %v1101
        %1103 = vmatmul.bf16.gmra.mxu0 %v423
        %v1104 = vpop.f32.mrf.mxu0
        %v1105 = vadd.f32 %v339, %v1104
        %v1106 = vpop.f32.mrf.mxu0
        %v1107 = vadd.f32 %v344, %v1106
        %1108 = vmatmul.bf16.gmra.mxu0 %v426
        %v1109 = vpop.f32.mrf.mxu0
        %v1110 = vadd.f32 %v349, %v1109
        %v1111 = vpop.f32.mrf.mxu0
        %v1112 = vadd.f32 %v354, %v1111
        %1113 = vmatmul.bf16.gmra.mxu0 %v429
        %v1114 = vpop.f32.mrf.mxu0
        %v1115 = vadd.f32 %v359, %v1114
        %v1116 = vpop.f32.mrf.mxu0
        %v1117 = vadd.f32 %v364, %v1116
        %1118 = vdwg.mxu0
        %v1119 = vmax.f32 %v1080, 0.0
        %v1120 = vmax.f32 %v1082, 0.0
        %v1121 = vmax.f32 %v1085, 0.0
        %v1122 = vmax.f32 %v1087, 0.0
        %v1123 = vmax.f32 %v1090, 0.0
        %v1124 = vmax.f32 %v1092, 0.0
        %v1125 = vmax.f32 %v1095, 0.0
        %v1126 = vmax.f32 %v1097, 0.0
        %v1127 = vmax.f32 %v1100, 0.0
        %v1128 = vmax.f32 %v1102, 0.0
        %v1129 = vmax.f32 %v1105, 0.0
        %v1130 = vmax.f32 %v1107, 0.0
        %v1131 = vmax.f32 %v1110, 0.0
        %v1132 = vmax.f32 %v1112, 0.0
        %v1133 = vmax.f32 %v1115, 0.0
        %v1134 = vmax.f32 %v1117, 0.0
        %v1135 = vld [vmem:[#allocation2] sm:$0xff]
        %v1136 = vld [vmem:[#allocation2 + $0x8] sm:$0xff]
        %v1137 = vld [vmem:[#allocation2 + $0x10] sm:$0xff]
        %v1138 = vld [vmem:[#allocation2 + $0x18] sm:$0xff]
        %v1139 = vld [vmem:[#allocation2 + $0x20] sm:$0xff]
        %v1140 = vld [vmem:[#allocation2 + $0x28] sm:$0xff]
        %v1141 = vld [vmem:[#allocation2 + $0x30] sm:$0xff]
        %v1142 = vld [vmem:[#allocation2 + $0x38] sm:$0xff]
        %v1143 = vld [vmem:[#allocation2 + $0x40] sm:$0xff]
        %v1144 = vld [vmem:[#allocation2 + $0x48] sm:$0xff]
        %v1145 = vld [vmem:[#allocation2 + $0x50] sm:$0xff]
        %v1146 = vld [vmem:[#allocation2 + $0x58] sm:$0xff]
        %v1147 = vld [vmem:[#allocation2 + $0x60] sm:$0xff]
        %v1148 = vld [vmem:[#allocation2 + $0x68] sm:$0xff]
        %v1149 = vld [vmem:[#allocation2 + $0x70] sm:$0xff]
        %v1150 = vld [vmem:[#allocation2 + $0x78] sm:$0xff]
        %1151 = vadd.xlane.f32.xlu0 %v1119
        %v1152 = vpop.xlane.xlu0 %1151
        %1153 = vadd.xlane.f32.xlu0 %v1120
        %v1154 = vpop.xlane.xlu0 %1153
        %1155 = vadd.xlane.f32.xlu0 %v1121
        %v1156 = vpop.xlane.xlu0 %1155
        %1157 = vadd.xlane.f32.xlu0 %v1122
        %v1158 = vpop.xlane.xlu0 %1157
        %1159 = vadd.xlane.f32.xlu0 %v1123
        %v1160 = vpop.xlane.xlu0 %1159
        %1161 = vadd.xlane.f32.xlu0 %v1124
        %v1162 = vpop.xlane.xlu0 %1161
        %1163 = vadd.xlane.f32.xlu0 %v1125
        %v1164 = vpop.xlane.xlu0 %1163
        %1165 = vadd.xlane.f32.xlu0 %v1126
        %v1166 = vpop.xlane.xlu0 %1165
        %1167 = vadd.xlane.f32.xlu0 %v1127
        %v1168 = vpop.xlane.xlu0 %1167
        %1169 = vadd.xlane.f32.xlu0 %v1128
        %v1170 = vpop.xlane.xlu0 %1169
        %1171 = vadd.xlane.f32.xlu0 %v1129
        %v1172 = vpop.xlane.xlu0 %1171
        %1173 = vadd.xlane.f32.xlu0 %v1130
        %v1174 = vpop.xlane.xlu0 %1173
        %1175 = vadd.xlane.f32.xlu0 %v1131
        %v1176 = vpop.xlane.xlu0 %1175
        %1177 = vadd.xlane.f32.xlu0 %v1132
        %v1178 = vpop.xlane.xlu0 %1177
        %1179 = vadd.xlane.f32.xlu0 %v1133
        %v1180 = vpop.xlane.xlu0 %1179
        %1181 = vadd.xlane.f32.xlu0 %v1134
        %v1182 = vpop.xlane.xlu0 %1181
        %v1183 = vadd.f32 %v1135, %v1152
        %v1184 = vadd.f32 %v1136, %v1154
        %v1185 = vadd.f32 %v1137, %v1156
        %v1186 = vadd.f32 %v1138, %v1158
        %v1187 = vadd.f32 %v1139, %v1160
        %v1188 = vadd.f32 %v1140, %v1162
        %v1189 = vadd.f32 %v1141, %v1164
        %v1190 = vadd.f32 %v1142, %v1166
        %v1191 = vadd.f32 %v1143, %v1168
        %v1192 = vadd.f32 %v1144, %v1170
        %v1193 = vadd.f32 %v1145, %v1172
        %v1194 = vadd.f32 %v1146, %v1174
        %v1195 = vadd.f32 %v1147, %v1176
        %v1196 = vadd.f32 %v1148, %v1178
        %v1197 = vadd.f32 %v1149, %v1180
        %v1198 = vadd.f32 %v1150, %v1182
        %vm1199 = vcmask 39968
        %1200 = vst.msk [vmem:[#allocation2] sm:$0xff] %vm1199, %v1183
        %1201 = vst.msk [vmem:[#allocation2 + $0x8] sm:$0xff] %vm1199, %v1184
        %1202 = vst.msk [vmem:[#allocation2 + $0x10] sm:$0xff] %vm1199, %v1185
        %1203 = vst.msk [vmem:[#allocation2 + $0x18] sm:$0xff] %vm1199, %v1186
        %1204 = vst.msk [vmem:[#allocation2 + $0x20] sm:$0xff] %vm1199, %v1187
        %1205 = vst.msk [vmem:[#allocation2 + $0x28] sm:$0xff] %vm1199, %v1188
        %1206 = vst.msk [vmem:[#allocation2 + $0x30] sm:$0xff] %vm1199, %v1189
        %1207 = vst.msk [vmem:[#allocation2 + $0x38] sm:$0xff] %vm1199, %v1190
        %1208 = vst.msk [vmem:[#allocation2 + $0x40] sm:$0xff] %vm1199, %v1191
        %1209 = vst.msk [vmem:[#allocation2 + $0x48] sm:$0xff] %vm1199, %v1192
        %1210 = vst.msk [vmem:[#allocation2 + $0x50] sm:$0xff] %vm1199, %v1193
        %1211 = vst.msk [vmem:[#allocation2 + $0x58] sm:$0xff] %vm1199, %v1194
        %1212 = vst.msk [vmem:[#allocation2 + $0x60] sm:$0xff] %vm1199, %v1195
        %1213 = vst.msk [vmem:[#allocation2 + $0x68] sm:$0xff] %vm1199, %v1196
        %1214 = vst.msk [vmem:[#allocation2 + $0x70] sm:$0xff] %vm1199, %v1197
        %1215 = vst.msk [vmem:[#allocation2 + $0x78] sm:$0xff] %vm1199, %v1198
        %v1216 = vld [vmem:[%s214 + $0x4] sm:$0x8]
        %v1217 = vld [vmem:[%s214 + $0x8] sm:$0x1]
        %v1220 = vunpack.c.l.b16 %v1216
        %v1221 = vunpack.c.l.b16 %v1217
        %v1222 = vpack.c.b16 %v1221, %v1220
        %v1224 = vshrl.u32 %v1222, 16
        %v1226 = vrot.slane %v1224, 3
        %v1227 = vshll.u32 %v1222, 16
        %v1229 = vrot.slane %v1227, 4
        %v1230 = vor.u32 %v1226, %v1229
        %v1232 = vand.u32 %v1230, %v434
        %1234 = vmatpush.bf16.msra.mxu0 0
        %1235 = vmatpush.bf16.msra.mxu0 0
        %1236 = vmatpush.bf16.msra.mxu0 0
        %1237 = vmatpush.bf16.msra.mxu0 0
        %1238 = vmatpush.bf16.msra.mxu0 0
        %1239 = vmatpush.bf16.msra.mxu0 0
        %1240 = vmatpush.bf16.msra.mxu0 0
        %1241 = vmatpush.bf16.msra.mxu0 %v1232
        %1242 = vmatmul.bf16.gmra.mxu0 %v408
        %v1243 = vpop.f32.mrf.mxu0
        %v1244 = vadd.f32 %v289, %v1243
        %v1245 = vpop.f32.mrf.mxu0
        %v1246 = vadd.f32 %v294, %v1245
        %1247 = vmatmul.bf16.gmra.mxu0 %v411
        %v1248 = vpop.f32.mrf.mxu0
        %v1249 = vadd.f32 %v299, %v1248
        %v1250 = vpop.f32.mrf.mxu0
        %v1251 = vadd.f32 %v304, %v1250
        %1252 = vmatmul.bf16.gmra.mxu0 %v414
        %v1253 = vpop.f32.mrf.mxu0
        %v1254 = vadd.f32 %v309, %v1253
        %v1255 = vpop.f32.mrf.mxu0
        %v1256 = vadd.f32 %v314, %v1255
        %1257 = vmatmul.bf16.gmra.mxu0 %v417
        %v1258 = vpop.f32.mrf.mxu0
        %v1259 = vadd.f32 %v319, %v1258
        %v1260 = vpop.f32.mrf.mxu0
        %v1261 = vadd.f32 %v324, %v1260
        %1262 = vmatmul.bf16.gmra.mxu0 %v420
        %v1263 = vpop.f32.mrf.mxu0
        %v1264 = vadd.f32 %v329, %v1263
        %v1265 = vpop.f32.mrf.mxu0
        %v1266 = vadd.f32 %v334, %v1265
        %1267 = vmatmul.bf16.gmra.mxu0 %v423
        %v1268 = vpop.f32.mrf.mxu0
        %v1269 = vadd.f32 %v339, %v1268
        %v1270 = vpop.f32.mrf.mxu0
        %v1271 = vadd.f32 %v344, %v1270
        %1272 = vmatmul.bf16.gmra.mxu0 %v426
        %v1273 = vpop.f32.mrf.mxu0
        %v1274 = vadd.f32 %v349, %v1273
        %v1275 = vpop.f32.mrf.mxu0
        %v1276 = vadd.f32 %v354, %v1275
        %1277 = vmatmul.bf16.gmra.mxu0 %v429
        %v1278 = vpop.f32.mrf.mxu0
        %v1279 = vadd.f32 %v359, %v1278
        %v1280 = vpop.f32.mrf.mxu0
        %v1281 = vadd.f32 %v364, %v1280
        %1282 = vdwg.mxu0
        %v1283 = vmax.f32 %v1244, 0.0
        %v1284 = vmax.f32 %v1246, 0.0
        %v1285 = vmax.f32 %v1249, 0.0
        %v1286 = vmax.f32 %v1251, 0.0
        %v1287 = vmax.f32 %v1254, 0.0
        %v1288 = vmax.f32 %v1256, 0.0
        %v1289 = vmax.f32 %v1259, 0.0
        %v1290 = vmax.f32 %v1261, 0.0
        %v1291 = vmax.f32 %v1264, 0.0
        %v1292 = vmax.f32 %v1266, 0.0
        %v1293 = vmax.f32 %v1269, 0.0
        %v1294 = vmax.f32 %v1271, 0.0
        %v1295 = vmax.f32 %v1274, 0.0
        %v1296 = vmax.f32 %v1276, 0.0
        %v1297 = vmax.f32 %v1279, 0.0
        %v1298 = vmax.f32 %v1281, 0.0
        %v1299 = vld [vmem:[#allocation2] sm:$0xff]
        %v1300 = vld [vmem:[#allocation2 + $0x8] sm:$0xff]
        %v1301 = vld [vmem:[#allocation2 + $0x10] sm:$0xff]
        %v1302 = vld [vmem:[#allocation2 + $0x18] sm:$0xff]
        %v1303 = vld [vmem:[#allocation2 + $0x20] sm:$0xff]
        %v1304 = vld [vmem:[#allocation2 + $0x28] sm:$0xff]
        %v1305 = vld [vmem:[#allocation2 + $0x30] sm:$0xff]
        %v1306 = vld [vmem:[#allocation2 + $0x38] sm:$0xff]
        %v1307 = vld [vmem:[#allocation2 + $0x40] sm:$0xff]
        %v1308 = vld [vmem:[#allocation2 + $0x48] sm:$0xff]
        %v1309 = vld [vmem:[#allocation2 + $0x50] sm:$0xff]
        %v1310 = vld [vmem:[#allocation2 + $0x58] sm:$0xff]
        %v1311 = vld [vmem:[#allocation2 + $0x60] sm:$0xff]
        %v1312 = vld [vmem:[#allocation2 + $0x68] sm:$0xff]
        %v1313 = vld [vmem:[#allocation2 + $0x70] sm:$0xff]
        %v1314 = vld [vmem:[#allocation2 + $0x78] sm:$0xff]
        %1315 = vadd.xlane.f32.xlu0 %v1283
        %v1316 = vpop.xlane.xlu0 %1315
        %1317 = vadd.xlane.f32.xlu0 %v1284
        %v1318 = vpop.xlane.xlu0 %1317
        %1319 = vadd.xlane.f32.xlu0 %v1285
        %v1320 = vpop.xlane.xlu0 %1319
        %1321 = vadd.xlane.f32.xlu0 %v1286
        %v1322 = vpop.xlane.xlu0 %1321
        %1323 = vadd.xlane.f32.xlu0 %v1287
        %v1324 = vpop.xlane.xlu0 %1323
        %1325 = vadd.xlane.f32.xlu0 %v1288
        %v1326 = vpop.xlane.xlu0 %1325
        %1327 = vadd.xlane.f32.xlu0 %v1289
        %v1328 = vpop.xlane.xlu0 %1327
        %1329 = vadd.xlane.f32.xlu0 %v1290
        %v1330 = vpop.xlane.xlu0 %1329
        %1331 = vadd.xlane.f32.xlu0 %v1291
        %v1332 = vpop.xlane.xlu0 %1331
        %1333 = vadd.xlane.f32.xlu0 %v1292
        %v1334 = vpop.xlane.xlu0 %1333
        %1335 = vadd.xlane.f32.xlu0 %v1293
        %v1336 = vpop.xlane.xlu0 %1335
        %1337 = vadd.xlane.f32.xlu0 %v1294
        %v1338 = vpop.xlane.xlu0 %1337
        %1339 = vadd.xlane.f32.xlu0 %v1295
        %v1340 = vpop.xlane.xlu0 %1339
        %1341 = vadd.xlane.f32.xlu0 %v1296
        %v1342 = vpop.xlane.xlu0 %1341
        %1343 = vadd.xlane.f32.xlu0 %v1297
        %v1344 = vpop.xlane.xlu0 %1343
        %1345 = vadd.xlane.f32.xlu0 %v1298
        %v1346 = vpop.xlane.xlu0 %1345
        %v1347 = vadd.f32 %v1299, %v1316
        %v1348 = vadd.f32 %v1300, %v1318
        %v1349 = vadd.f32 %v1301, %v1320
        %v1350 = vadd.f32 %v1302, %v1322
        %v1351 = vadd.f32 %v1303, %v1324
        %v1352 = vadd.f32 %v1304, %v1326
        %v1353 = vadd.f32 %v1305, %v1328
        %v1354 = vadd.f32 %v1306, %v1330
        %v1355 = vadd.f32 %v1307, %v1332
        %v1356 = vadd.f32 %v1308, %v1334
        %v1357 = vadd.f32 %v1309, %v1336
        %v1358 = vadd.f32 %v1310, %v1338
        %v1359 = vadd.f32 %v1311, %v1340
        %v1360 = vadd.f32 %v1312, %v1342
        %v1361 = vadd.f32 %v1313, %v1344
        %v1362 = vadd.f32 %v1314, %v1346
        %vm1363 = vcmask 48168
        %1364 = vst.msk [vmem:[#allocation2] sm:$0xff] %vm1363, %v1347
        %1365 = vst.msk [vmem:[#allocation2 + $0x8] sm:$0xff] %vm1363, %v1348
        %1366 = vst.msk [vmem:[#allocation2 + $0x10] sm:$0xff] %vm1363, %v1349
        %1367 = vst.msk [vmem:[#allocation2 + $0x18] sm:$0xff] %vm1363, %v1350
        %1368 = vst.msk [vmem:[#allocation2 + $0x20] sm:$0xff] %vm1363, %v1351
        %1369 = vst.msk [vmem:[#allocation2 + $0x28] sm:$0xff] %vm1363, %v1352
        %1370 = vst.msk [vmem:[#allocation2 + $0x30] sm:$0xff] %vm1363, %v1353
        %1371 = vst.msk [vmem:[#allocation2 + $0x38] sm:$0xff] %vm1363, %v1354
        %1372 = vst.msk [vmem:[#allocation2 + $0x40] sm:$0xff] %vm1363, %v1355
        %1373 = vst.msk [vmem:[#allocation2 + $0x48] sm:$0xff] %vm1363, %v1356
        %1374 = vst.msk [vmem:[#allocation2 + $0x50] sm:$0xff] %vm1363, %v1357
        %1375 = vst.msk [vmem:[#allocation2 + $0x58] sm:$0xff] %vm1363, %v1358
        %1376 = vst.msk [vmem:[#allocation2 + $0x60] sm:$0xff] %vm1363, %v1359
        %1377 = vst.msk [vmem:[#allocation2 + $0x68] sm:$0xff] %vm1363, %v1360
        %1378 = vst.msk [vmem:[#allocation2 + $0x70] sm:$0xff] %vm1363, %v1361
        %1379 = vst.msk [vmem:[#allocation2 + $0x78] sm:$0xff] %vm1363, %v1362
        %v1380 = vld [vmem:[%s214 + $0x8] sm:$0x6]
        %v1382 = vunpack.c.l.b16 %v1380
        %v1383 = vpack.c.b16 %v1382, %v1382
        %v1384 = vrot.slane %v1383, 1
        %v1386 = vand.u32 %v1384, %v434
        %1388 = vmatpush.bf16.msra.mxu0 0
        %1389 = vmatpush.bf16.msra.mxu0 0
        %1390 = vmatpush.bf16.msra.mxu0 0
        %1391 = vmatpush.bf16.msra.mxu0 0
        %1392 = vmatpush.bf16.msra.mxu0 0
        %1393 = vmatpush.bf16.msra.mxu0 0
        %1394 = vmatpush.bf16.msra.mxu0 0
        %1395 = vmatpush.bf16.msra.mxu0 %v1386
        %1396 = vmatmul.bf16.gmra.mxu0 %v408
        %v1397 = vpop.f32.mrf.mxu0
        %v1398 = vadd.f32 %v289, %v1397
        %v1399 = vpop.f32.mrf.mxu0
        %v1400 = vadd.f32 %v294, %v1399
        %1401 = vmatmul.bf16.gmra.mxu0 %v411
        %v1402 = vpop.f32.mrf.mxu0
        %v1403 = vadd.f32 %v299, %v1402
        %v1404 = vpop.f32.mrf.mxu0
        %v1405 = vadd.f32 %v304, %v1404
        %1406 = vmatmul.bf16.gmra.mxu0 %v414
        %v1407 = vpop.f32.mrf.mxu0
        %v1408 = vadd.f32 %v309, %v1407
        %v1409 = vpop.f32.mrf.mxu0
        %v1410 = vadd.f32 %v314, %v1409
        %1411 = vmatmul.bf16.gmra.mxu0 %v417
        %v1412 = vpop.f32.mrf.mxu0
        %v1413 = vadd.f32 %v319, %v1412
        %v1414 = vpop.f32.mrf.mxu0
        %v1415 = vadd.f32 %v324, %v1414
        %1416 = vmatmul.bf16.gmra.mxu0 %v420
        %v1417 = vpop.f32.mrf.mxu0
        %v1418 = vadd.f32 %v329, %v1417
        %v1419 = vpop.f32.mrf.mxu0
        %v1420 = vadd.f32 %v334, %v1419
        %1421 = vmatmul.bf16.gmra.mxu0 %v423
        %v1422 = vpop.f32.mrf.mxu0
        %v1423 = vadd.f32 %v339, %v1422
        %v1424 = vpop.f32.mrf.mxu0
        %v1425 = vadd.f32 %v344, %v1424
        %1426 = vmatmul.bf16.gmra.mxu0 %v426
        %v1427 = vpop.f32.mrf.mxu0
        %v1428 = vadd.f32 %v349, %v1427
        %v1429 = vpop.f32.mrf.mxu0
        %v1430 = vadd.f32 %v354, %v1429
        %1431 = vmatmul.bf16.gmra.mxu0 %v429
        %v1432 = vpop.f32.mrf.mxu0
        %v1433 = vadd.f32 %v359, %v1432
        %v1434 = vpop.f32.mrf.mxu0
        %v1435 = vadd.f32 %v364, %v1434
        %1436 = vdwg.mxu0
        %v1437 = vmax.f32 %v1398, 0.0
        %v1438 = vmax.f32 %v1400, 0.0
        %v1439 = vmax.f32 %v1403, 0.0
        %v1440 = vmax.f32 %v1405, 0.0
        %v1441 = vmax.f32 %v1408, 0.0
        %v1442 = vmax.f32 %v1410, 0.0
        %v1443 = vmax.f32 %v1413, 0.0
        %v1444 = vmax.f32 %v1415, 0.0
        %v1445 = vmax.f32 %v1418, 0.0
        %v1446 = vmax.f32 %v1420, 0.0
        %v1447 = vmax.f32 %v1423, 0.0
        %v1448 = vmax.f32 %v1425, 0.0
        %v1449 = vmax.f32 %v1428, 0.0
        %v1450 = vmax.f32 %v1430, 0.0
        %v1451 = vmax.f32 %v1433, 0.0
        %v1452 = vmax.f32 %v1435, 0.0
        %v1453 = vld [vmem:[#allocation2] sm:$0xff]
        %v1454 = vld [vmem:[#allocation2 + $0x8] sm:$0xff]
        %v1455 = vld [vmem:[#allocation2 + $0x10] sm:$0xff]
        %v1456 = vld [vmem:[#allocation2 + $0x18] sm:$0xff]
        %v1457 = vld [vmem:[#allocation2 + $0x20] sm:$0xff]
        %v1458 = vld [vmem:[#allocation2 + $0x28] sm:$0xff]
        %v1459 = vld [vmem:[#allocation2 + $0x30] sm:$0xff]
        %v1460 = vld [vmem:[#allocation2 + $0x38] sm:$0xff]
        %v1461 = vld [vmem:[#allocation2 + $0x40] sm:$0xff]
        %v1462 = vld [vmem:[#allocation2 + $0x48] sm:$0xff]
        %v1463 = vld [vmem:[#allocation2 + $0x50] sm:$0xff]
        %v1464 = vld [vmem:[#allocation2 + $0x58] sm:$0xff]
        %v1465 = vld [vmem:[#allocation2 + $0x60] sm:$0xff]
        %v1466 = vld [vmem:[#allocation2 + $0x68] sm:$0xff]
        %v1467 = vld [vmem:[#allocation2 + $0x70] sm:$0xff]
        %v1468 = vld [vmem:[#allocation2 + $0x78] sm:$0xff]
        %1469 = vadd.xlane.f32.xlu0 %v1437
        %v1470 = vpop.xlane.xlu0 %1469
        %1471 = vadd.xlane.f32.xlu0 %v1438
        %v1472 = vpop.xlane.xlu0 %1471
        %1473 = vadd.xlane.f32.xlu0 %v1439
        %v1474 = vpop.xlane.xlu0 %1473
        %1475 = vadd.xlane.f32.xlu0 %v1440
        %v1476 = vpop.xlane.xlu0 %1475
        %1477 = vadd.xlane.f32.xlu0 %v1441
        %v1478 = vpop.xlane.xlu0 %1477
        %1479 = vadd.xlane.f32.xlu0 %v1442
        %v1480 = vpop.xlane.xlu0 %1479
        %1481 = vadd.xlane.f32.xlu0 %v1443
        %v1482 = vpop.xlane.xlu0 %1481
        %1483 = vadd.xlane.f32.xlu0 %v1444
        %v1484 = vpop.xlane.xlu0 %1483
        %1485 = vadd.xlane.f32.xlu0 %v1445
        %v1486 = vpop.xlane.xlu0 %1485
        %1487 = vadd.xlane.f32.xlu0 %v1446
        %v1488 = vpop.xlane.xlu0 %1487
        %1489 = vadd.xlane.f32.xlu0 %v1447
        %v1490 = vpop.xlane.xlu0 %1489
        %1491 = vadd.xlane.f32.xlu0 %v1448
        %v1492 = vpop.xlane.xlu0 %1491
        %1493 = vadd.xlane.f32.xlu0 %v1449
        %v1494 = vpop.xlane.xlu0 %1493
        %1495 = vadd.xlane.f32.xlu0 %v1450
        %v1496 = vpop.xlane.xlu0 %1495
        %1497 = vadd.xlane.f32.xlu0 %v1451
        %v1498 = vpop.xlane.xlu0 %1497
        %1499 = vadd.xlane.f32.xlu0 %v1452
        %v1500 = vpop.xlane.xlu0 %1499
        %v1501 = vadd.f32 %v1453, %v1470
        %v1502 = vadd.f32 %v1454, %v1472
        %v1503 = vadd.f32 %v1455, %v1474
        %v1504 = vadd.f32 %v1456, %v1476
        %v1505 = vadd.f32 %v1457, %v1478
        %v1506 = vadd.f32 %v1458, %v1480
        %v1507 = vadd.f32 %v1459, %v1482
        %v1508 = vadd.f32 %v1460, %v1484
        %v1509 = vadd.f32 %v1461, %v1486
        %v1510 = vadd.f32 %v1462, %v1488
        %v1511 = vadd.f32 %v1463, %v1490
        %v1512 = vadd.f32 %v1464, %v1492
        %v1513 = vadd.f32 %v1465, %v1494
        %v1514 = vadd.f32 %v1466, %v1496
        %v1515 = vadd.f32 %v1467, %v1498
        %v1516 = vadd.f32 %v1468, %v1500
        %vm1517 = vcmask 56368
        %1518 = vst.msk [vmem:[#allocation2] sm:$0xff] %vm1517, %v1501
        %1519 = vst.msk [vmem:[#allocation2 + $0x8] sm:$0xff] %vm1517, %v1502
        %1520 = vst.msk [vmem:[#allocation2 + $0x10] sm:$0xff] %vm1517, %v1503
        %1521 = vst.msk [vmem:[#allocation2 + $0x18] sm:$0xff] %vm1517, %v1504
        %1522 = vst.msk [vmem:[#allocation2 + $0x20] sm:$0xff] %vm1517, %v1505
        %1523 = vst.msk [vmem:[#allocation2 + $0x28] sm:$0xff] %vm1517, %v1506
        %1524 = vst.msk [vmem:[#allocation2 + $0x30] sm:$0xff] %vm1517, %v1507
        %1525 = vst.msk [vmem:[#allocation2 + $0x38] sm:$0xff] %vm1517, %v1508
        %1526 = vst.msk [vmem:[#allocation2 + $0x40] sm:$0xff] %vm1517, %v1509
        %1527 = vst.msk [vmem:[#allocation2 + $0x48] sm:$0xff] %vm1517, %v1510
        %1528 = vst.msk [vmem:[#allocation2 + $0x50] sm:$0xff] %vm1517, %v1511
        %1529 = vst.msk [vmem:[#allocation2 + $0x58] sm:$0xff] %vm1517, %v1512
        %1530 = vst.msk [vmem:[#allocation2 + $0x60] sm:$0xff] %vm1517, %v1513
        %1531 = vst.msk [vmem:[#allocation2 + $0x68] sm:$0xff] %vm1517, %v1514
        %1532 = vst.msk [vmem:[#allocation2 + $0x70] sm:$0xff] %vm1517, %v1515
        %1533 = vst.msk [vmem:[#allocation2 + $0x78] sm:$0xff] %vm1517, %v1516
        %v1534 = vld [vmem:[%s214 + $0x8] sm:$0xc]
        %v1536 = vunpack.c.l.b16 %v1534
        %v1537 = vpack.c.b16 %v1536, %v1536
        %v1539 = vshrl.u32 %v1537, 16
        %v1541 = vrot.slane %v1539, 2
        %v1542 = vshll.u32 %v1537, 16
        %v1544 = vrot.slane %v1542, 3
        %v1545 = vor.u32 %v1541, %v1544
        %v1547 = vand.u32 %v1545, %v434
        %1549 = vmatpush.bf16.msra.mxu0 0
        %1550 = vmatpush.bf16.msra.mxu0 0
        %1551 = vmatpush.bf16.msra.mxu0 0
        %1552 = vmatpush.bf16.msra.mxu0 0
        %1553 = vmatpush.bf16.msra.mxu0 0
        %1554 = vmatpush.bf16.msra.mxu0 0
        %1555 = vmatpush.bf16.msra.mxu0 0
        %1556 = vmatpush.bf16.msra.mxu0 %v1547
        %1557 = vmatmul.bf16.gmra.mxu0 %v408
        %v1558 = vpop.f32.mrf.mxu0
        %v1559 = vadd.f32 %v289, %v1558
        %v1560 = vpop.f32.mrf.mxu0
        %v1561 = vadd.f32 %v294, %v1560
        %1562 = vmatmul.bf16.gmra.mxu0 %v411
        %v1563 = vpop.f32.mrf.mxu0
        %v1564 = vadd.f32 %v299, %v1563
        %v1565 = vpop.f32.mrf.mxu0
        %v1566 = vadd.f32 %v304, %v1565
        %1567 = vmatmul.bf16.gmra.mxu0 %v414
        %v1568 = vpop.f32.mrf.mxu0
        %v1569 = vadd.f32 %v309, %v1568
        %v1570 = vpop.f32.mrf.mxu0
        %v1571 = vadd.f32 %v314, %v1570
        %1572 = vmatmul.bf16.gmra.mxu0 %v417
        %v1573 = vpop.f32.mrf.mxu0
        %v1574 = vadd.f32 %v319, %v1573
        %v1575 = vpop.f32.mrf.mxu0
        %v1576 = vadd.f32 %v324, %v1575
        %1577 = vmatmul.bf16.gmra.mxu0 %v420
        %v1578 = vpop.f32.mrf.mxu0
        %v1579 = vadd.f32 %v329, %v1578
        %v1580 = vpop.f32.mrf.mxu0
        %v1581 = vadd.f32 %v334, %v1580
        %1582 = vmatmul.bf16.gmra.mxu0 %v423
        %v1583 = vpop.f32.mrf.mxu0
        %v1584 = vadd.f32 %v339, %v1583
        %v1585 = vpop.f32.mrf.mxu0
        %v1586 = vadd.f32 %v344, %v1585
        %1587 = vmatmul.bf16.gmra.mxu0 %v426
        %v1588 = vpop.f32.mrf.mxu0
        %v1589 = vadd.f32 %v349, %v1588
        %v1590 = vpop.f32.mrf.mxu0
        %v1591 = vadd.f32 %v354, %v1590
        %1592 = vmatmul.bf16.gmra.mxu0 %v429
        %v1593 = vpop.f32.mrf.mxu0
        %v1594 = vadd.f32 %v359, %v1593
        %v1595 = vpop.f32.mrf.mxu0
        %v1596 = vadd.f32 %v364, %v1595
        %1597 = vdwg.mxu0
        %v1598 = vmax.f32 %v1559, 0.0
        %v1599 = vmax.f32 %v1561, 0.0
        %v1600 = vmax.f32 %v1564, 0.0
        %v1601 = vmax.f32 %v1566, 0.0
        %v1602 = vmax.f32 %v1569, 0.0
        %v1603 = vmax.f32 %v1571, 0.0
        %v1604 = vmax.f32 %v1574, 0.0
        %v1605 = vmax.f32 %v1576, 0.0
        %v1606 = vmax.f32 %v1579, 0.0
        %v1607 = vmax.f32 %v1581, 0.0
        %v1608 = vmax.f32 %v1584, 0.0
        %v1609 = vmax.f32 %v1586, 0.0
        %v1610 = vmax.f32 %v1589, 0.0
        %v1611 = vmax.f32 %v1591, 0.0
        %v1612 = vmax.f32 %v1594, 0.0
        %v1613 = vmax.f32 %v1596, 0.0
        %v1614 = vld [vmem:[#allocation2] sm:$0xff]
        %v1615 = vld [vmem:[#allocation2 + $0x8] sm:$0xff]
        %v1616 = vld [vmem:[#allocation2 + $0x10] sm:$0xff]
        %v1617 = vld [vmem:[#allocation2 + $0x18] sm:$0xff]
        %v1618 = vld [vmem:[#allocation2 + $0x20] sm:$0xff]
        %v1619 = vld [vmem:[#allocation2 + $0x28] sm:$0xff]
        %v1620 = vld [vmem:[#allocation2 + $0x30] sm:$0xff]
        %v1621 = vld [vmem:[#allocation2 + $0x38] sm:$0xff]
        %v1622 = vld [vmem:[#allocation2 + $0x40] sm:$0xff]
        %v1623 = vld [vmem:[#allocation2 + $0x48] sm:$0xff]
        %v1624 = vld [vmem:[#allocation2 + $0x50] sm:$0xff]
        %v1625 = vld [vmem:[#allocation2 + $0x58] sm:$0xff]
        %v1626 = vld [vmem:[#allocation2 + $0x60] sm:$0xff]
        %v1627 = vld [vmem:[#allocation2 + $0x68] sm:$0xff]
        %v1628 = vld [vmem:[#allocation2 + $0x70] sm:$0xff]
        %v1629 = vld [vmem:[#allocation2 + $0x78] sm:$0xff]
        %1630 = vadd.xlane.f32.xlu0 %v1598
        %v1631 = vpop.xlane.xlu0 %1630
        %1632 = vadd.xlane.f32.xlu0 %v1599
        %v1633 = vpop.xlane.xlu0 %1632
        %1634 = vadd.xlane.f32.xlu0 %v1600
        %v1635 = vpop.xlane.xlu0 %1634
        %1636 = vadd.xlane.f32.xlu0 %v1601
        %v1637 = vpop.xlane.xlu0 %1636
        %1638 = vadd.xlane.f32.xlu0 %v1602
        %v1639 = vpop.xlane.xlu0 %1638
        %1640 = vadd.xlane.f32.xlu0 %v1603
        %v1641 = vpop.xlane.xlu0 %1640
        %1642 = vadd.xlane.f32.xlu0 %v1604
        %v1643 = vpop.xlane.xlu0 %1642
        %1644 = vadd.xlane.f32.xlu0 %v1605
        %v1645 = vpop.xlane.xlu0 %1644
        %1646 = vadd.xlane.f32.xlu0 %v1606
        %v1647 = vpop.xlane.xlu0 %1646
        %1648 = vadd.xlane.f32.xlu0 %v1607
        %v1649 = vpop.xlane.xlu0 %1648
        %1650 = vadd.xlane.f32.xlu0 %v1608
        %v1651 = vpop.xlane.xlu0 %1650
        %1652 = vadd.xlane.f32.xlu0 %v1609
        %v1653 = vpop.xlane.xlu0 %1652
        %1654 = vadd.xlane.f32.xlu0 %v1610
        %v1655 = vpop.xlane.xlu0 %1654
        %1656 = vadd.xlane.f32.xlu0 %v1611
        %v1657 = vpop.xlane.xlu0 %1656
        %1658 = vadd.xlane.f32.xlu0 %v1612
        %v1659 = vpop.xlane.xlu0 %1658
        %1660 = vadd.xlane.f32.xlu0 %v1613
        %v1661 = vpop.xlane.xlu0 %1660
        %v1662 = vadd.f32 %v1614, %v1631
        %v1663 = vadd.f32 %v1615, %v1633
        %v1664 = vadd.f32 %v1616, %v1635
        %v1665 = vadd.f32 %v1617, %v1637
        %v1666 = vadd.f32 %v1618, %v1639
        %v1667 = vadd.f32 %v1619, %v1641
        %v1668 = vadd.f32 %v1620, %v1643
        %v1669 = vadd.f32 %v1621, %v1645
        %v1670 = vadd.f32 %v1622, %v1647
        %v1671 = vadd.f32 %v1623, %v1649
        %v1672 = vadd.f32 %v1624, %v1651
        %v1673 = vadd.f32 %v1625, %v1653
        %v1674 = vadd.f32 %v1626, %v1655
        %v1675 = vadd.f32 %v1627, %v1657
        %v1676 = vadd.f32 %v1628, %v1659
        %v1677 = vadd.f32 %v1629, %v1661
        %vm1678 = vcmask 64568
        %1679 = vst.msk [vmem:[#allocation2] sm:$0xff] %vm1678, %v1662
        %1680 = vst.msk [vmem:[#allocation2 + $0x8] sm:$0xff] %vm1678, %v1663
        %1681 = vst.msk [vmem:[#allocation2 + $0x10] sm:$0xff] %vm1678, %v1664
        %1682 = vst.msk [vmem:[#allocation2 + $0x18] sm:$0xff] %vm1678, %v1665
        %1683 = vst.msk [vmem:[#allocation2 + $0x20] sm:$0xff] %vm1678, %v1666
        %1684 = vst.msk [vmem:[#allocation2 + $0x28] sm:$0xff] %vm1678, %v1667
        %1685 = vst.msk [vmem:[#allocation2 + $0x30] sm:$0xff] %vm1678, %v1668
        %1686 = vst.msk [vmem:[#allocation2 + $0x38] sm:$0xff] %vm1678, %v1669
        %1687 = vst.msk [vmem:[#allocation2 + $0x40] sm:$0xff] %vm1678, %v1670
        %1688 = vst.msk [vmem:[#allocation2 + $0x48] sm:$0xff] %vm1678, %v1671
        %1689 = vst.msk [vmem:[#allocation2 + $0x50] sm:$0xff] %vm1678, %v1672
        %1690 = vst.msk [vmem:[#allocation2 + $0x58] sm:$0xff] %vm1678, %v1673
        %1691 = vst.msk [vmem:[#allocation2 + $0x60] sm:$0xff] %vm1678, %v1674
        %1692 = vst.msk [vmem:[#allocation2 + $0x68] sm:$0xff] %vm1678, %v1675
        %1693 = vst.msk [vmem:[#allocation2 + $0x70] sm:$0xff] %vm1678, %v1676
        %1694 = vst.msk [vmem:[#allocation2 + $0x78] sm:$0xff] %vm1678, %v1677
        %p1695 = scmp.eq.s32.totalorder %s20, 1
        // Predicated region
        $region78: #{tpu_custom_call.1} parent=68 // pred_check
          %p1696 = pneg %p1695
        $region79: #{tpu_custom_call.1} parent=68 // pred_check_branch
          %1698 = sbr.rel (%p1696) target = $region81
        $region80: #{tpu_custom_call.1} parent=68 // pred_region
          %v1699 = vld [vmem:[#allocation2] sm:$0xff]
          %v1700 = vld [vmem:[#allocation2 + $0x8] sm:$0xff]
          %v1701 = vld [vmem:[#allocation2 + $0x10] sm:$0xff]
          %v1702 = vld [vmem:[#allocation2 + $0x18] sm:$0xff]
          %v1703 = vld [vmem:[#allocation2 + $0x20] sm:$0xff]
          %v1704 = vld [vmem:[#allocation2 + $0x28] sm:$0xff]
          %v1705 = vld [vmem:[#allocation2 + $0x30] sm:$0xff]
          %v1706 = vld [vmem:[#allocation2 + $0x38] sm:$0xff]
          %v1707 = vld [vmem:[#allocation2 + $0x40] sm:$0xff]
          %v1708 = vld [vmem:[#allocation2 + $0x48] sm:$0xff]
          %v1709 = vld [vmem:[#allocation2 + $0x50] sm:$0xff]
          %v1710 = vld [vmem:[#allocation2 + $0x58] sm:$0xff]
          %v1711 = vld [vmem:[#allocation2 + $0x60] sm:$0xff]
          %v1712 = vld [vmem:[#allocation2 + $0x68] sm:$0xff]
          %v1713 = vld [vmem:[#allocation2 + $0x70] sm:$0xff]
          %v1714 = vld [vmem:[#allocation2 + $0x78] sm:$0xff]
          %1715 = vxpose.xlu0.b32.start [1/16] %v1699, 128
          %1716 = vxpose.xlu0.b32.cont [2/16] %v1700, 128
          %1717 = vxpose.xlu0.b32.cont [3/16] %v1701, 128
          %1718 = vxpose.xlu0.b32.cont [4/16] %v1702, 128
          %1719 = vxpose.xlu0.b32.cont [5/16] %v1703, 128
          %1720 = vxpose.xlu0.b32.cont [6/16] %v1704, 128
          %1721 = vxpose.xlu0.b32.cont [7/16] %v1705, 128
          %1722 = vxpose.xlu0.b32.cont [8/16] %v1706, 128
          %1723 = vxpose.xlu0.b32.cont [9/16] %v1707, 128
          %1724 = vxpose.xlu0.b32.cont [10/16] %v1708, 128
          %1725 = vxpose.xlu0.b32.cont [11/16] %v1709, 128
          %1726 = vxpose.xlu0.b32.cont [12/16] %v1710, 128
          %1727 = vxpose.xlu0.b32.cont [13/16] %v1711, 128
          %1728 = vxpose.xlu0.b32.cont [14/16] %v1712, 128
          %1729 = vxpose.xlu0.b32.cont [15/16] %v1713, 128
          %1730 = vxpose.xlu0.b32.end [16/16] %v1714, 128
          %v1731 = vpop.trf.xlu0
          %v1732 = vpop.trf.xlu0
          %v1733 = vpop.trf.xlu0
          %v1734 = vpop.trf.xlu0
          %v1735 = vpop.trf.xlu0
          %v1736 = vpop.trf.xlu0
          %v1737 = vpop.trf.xlu0
          %v1738 = vpop.trf.xlu0
          %v1739 = vpop.trf.xlu0
          %v1740 = vpop.trf.xlu0
          %v1741 = vpop.trf.xlu0
          %v1742 = vpop.trf.xlu0
          %v1743 = vpop.trf.xlu0
          %v1744 = vpop.trf.xlu0
          %v1745 = vpop.trf.xlu0
          %v1746 = vpop.trf.xlu0
          %v1747 = vmul.f32 %v1731, 0.00390625
          %1748 = vst [vmem:[#allocation4] sm:$0xff] %v1747
        $region81: #{tpu_custom_call.1} parent=68 // pred_fallthru
          _
        // Predicated region
        $region82: #{tpu_custom_call.1} parent=68 // pred_check
          %p1749 = pneg %p115
        $region83: #{tpu_custom_call.1} parent=68 // pred_check_branch
          %1751 = sbr.rel (%p1749) target = $region85
        $region84: #{tpu_custom_call.1} parent=68 // pred_region
          %1753 = vsyncadd [#allocation5], 0
          %s1754 = smul.addr %s19, 8
          %s1755 = scalar_lea.hbm %s3, %s1754
          %s1757 = sshll.u32 [#allocation4], 4
          %s1758 = int_to_ptr.vmem [resolvable:$true] %s1757
          %s1759 = sshll.u32 %s1755, 4
          %s1760 = int_to_ptr.hbm [resolvable:$true] %s1759
          %1762 = dma.vmem_to_hbm [thread:$0]  %s1758, 128, %s1760, [#allocation5]
        $region85: #{tpu_custom_call.1} parent=68 // pred_fallthru
          _
        // Predicated region
        $region86: #{tpu_custom_call.1} parent=68 // pred_check
          %p1763 = pneg %p115
        $region87: #{tpu_custom_call.1} parent=68 // pred_check_branch
          %1765 = sbr.rel (%p1763) target = $region89
        $region88: #{tpu_custom_call.1} parent=68 // pred_region
          %1767 = dma.done [#allocation5], 128
        $region89: #{tpu_custom_call.1} parent=68 // pred_fallthru
          _
      $region69: #{tpu_custom_call.1} parent=5 // pred_fallthru
        _
      %p1768 = scmp.le.s32.totalorder 2, %s10
      // Predicated region
      $region90: #{tpu_custom_call.1} parent=5 // pred_check
        %p1769 = pneg %p1768
      $region91: #{tpu_custom_call.1} parent=5 // pred_check_branch
        %1771 = sbr.rel (%p1769) target = $region93
      $region92: #{tpu_custom_call.1} parent=5 // pred_region
        %s1772 = ssub.s32 %s10, 2
      $region93: #{tpu_custom_call.1} parent=5 // pred_fallthru
        _
    $region6: #{tpu_custom_call.1} parent=1 // loop_footer
      %s14 = sadd.s32 1, %s10
    $region7: #{tpu_custom_call.1} parent=1 // loop_footer_branch
      %9 = sbr.rel target = $region3
    $region8: #{tpu_custom_call.1} parent=1 // loop_exit
      _
    %1773 = vsyncpa [#allocation5], 1
    %s1774 = scalar_lea.sflag [#allocation5], 1
    %1775 = vsyncpa %s1774, 1

</llo_original>
